<compile_context>
chip_gen: v7x
topology: tpu7x:2x2x1
jax: 0.10.0
libtpu: 0.0.40
codegen_flags: <defaults>
</compile_context>

<pallas_src>
import numpy as np
import jax
import jax.numpy as jnp
from jax.experimental import pallas as pl
from jax.experimental.pallas import tpu as pltpu

BN_EPS = 1e-5


# ----------------------------- Pallas kernel ------------------------------- #
def _make_fused_kernel(H, W, Cin, Cout, Wp, LV, LW, offs):
    """Fused conv3x3+BN+ReLU -> phase-decomposed ConvTranspose4x4+BN+ReLU.

    Geometry (per batch element, channels-first, spatial flattened to lanes):
      Wp  = W + 2                      padded row length
      LV  = roundup((H+2)*Wp, 128)     lane-dense operand / output width
      LW  = roundup(2*Wp+2+LV, 128)    width that admits every tap window
      offs = r*Wp + c, r,c in [0,3)    the 9 lane shifts used by both stages
    """

    def kernel(x_ref, w1_ref, s1_ref, w2_ref, s2_ref, o_ref,
               y1_ref, xs_ref, ys_ref):
        # -------- stage 1: Conv2d 3x3 s1 p1 (bias=False) + BN1 + ReLU --------
        # Stacked-K operand: 9 lane-shifted windows of the flat padded input,
        # each materialized exactly once into the (9*Cin, LV) scratch.
        for t, off in enumerate(offs):
            xs_ref[t * Cin:(t + 1) * Cin, :] = x_ref[0, :, off:off + LV]
        # ONE GEMM, K = 9*Cin (was 9 tiny K=Cin matmuls).
        acc = jnp.dot(w1_ref[...], xs_ref[...],
                      preferred_element_type=jnp.float32)          # (Cout, LV)

        # Interior mask from iota (no mask DMA): keep rows 1..H, cols 1..W of
        # the flattened (H+2, Wp) padded grid; zero border + lane-pad tail.
        v = jax.lax.broadcasted_iota(jnp.int32, (1, LV), 1)
        ok = (v >= Wp + 1) & (v <= Wp + W)
        for r in range(2, H + 1):
            ok = ok | ((v >= r * Wp + 1) & (v <= r * Wp + W))
        mask = ok.astype(jnp.float32)
        y1 = jnp.maximum(acc + s1_ref[...], 0.0) * mask

        # Zero-padded intermediate stays in VMEM (never round-trips HBM).
        y1_ref[:, :LV] = y1.astype(y1_ref.dtype)
        y1_ref[:, LV:] = jnp.zeros((Cout, LW - LV), y1_ref.dtype)

        # ---- stage 2: ConvTranspose2d 4x4 s2 p1 (+bias) + BN2 + ReLU --------
        # All 4 sub-pixel phases in ONE GEMM over a 9-way shifted stack of y1.
        for t, off in enumerate(offs):
            ys_ref[t * Cout:(t + 1) * Cout, :] = y1_ref[:, off:off + LV]
        acc2 = jnp.dot(w2_ref[...], ys_ref[...],
                       preferred_element_type=jnp.float32)         # (4*Cout, LV)
        # Lane-dense (LV = multiple of 128) bf16 store.
        o_ref[0] = jnp.maximum(acc2 + s2_ref[...], 0.0).astype(o_ref.dtype)

    return kernel


# ------------------------------- JAX glue ----------------------------------- #
def basic_block_forward(x_nchw, params):
    N, Cin, H, W = x_nchw.shape
    w1_t = params["conv1_w"]              # (Cout, Cin, 3, 3)   Conv2d, bias=False
    w2_t = params["conv2_w"]              # (Cout, Cout, 4, 4)  ConvT (in,out,kh,kw)
    Cout = w1_t.shape[0]

    # ---- static geometry ----
    Wp = W + 2                                     # padded row length
    pad_tot = (H + 2) * Wp                         # flattened padded grid
    S2 = H * Wp                                    # stage-2 virtual grid (kept cols)
    front = Wp + 1                                 # front zero-pad of flat input
    LV = -(-pad_tot // 128) * 128                  # lane-dense operand/output width
    LW = -(-(2 * Wp + 2 + LV) // 128) * 128        # width admitting all tap windows
    offs = tuple(r * Wp + c for r in range(3) for c in range(3))

    # ---- input: bf16 -> zero-pad by 1 -> flatten spatial -> front+lane pad ----
    x = x_nchw.astype(jnp.bfloat16)
    xp = jnp.pad(x, ((0, 0), (0, 0), (1, 1), (1, 1))).reshape(N, Cin, pad_tot)
    xflat = jnp.pad(xp, ((0, 0), (0, 0), (front, LW - front - pad_tot)))

    # ---- stage-1 weights: fold BN1 scale, reshape to (Cout, 9*Cin), bf16 ----
    scale1 = params["bn1_g"] * jax.lax.rsqrt(params["bn1_v"] + BN_EPS)
    shift1 = (params["bn1_b"] - params["bn1_m"] * scale1).reshape(Cout, 1)
    shift1 = shift1.astype(jnp.float32)
    w1 = w1_t * scale1[:, None, None, None]
    w1 = jnp.transpose(w1, (0, 2, 3, 1)).reshape(Cout, 9 * Cin).astype(jnp.bfloat16)

    # ---- stage-2 weights: phase-decomposed ConvTranspose packed into ONE
    #      (4*Cout, 9*Cout) matrix (zeros where a phase does not use a tap),
    #      BN2 scale folded; rows = phase*Cout + cout, cols = (r*3+c)*Cout + cin.
    scale2 = params["bn2_g"] * jax.lax.rsqrt(params["bn2_v"] + BN_EPS)
    shift2 = ((params["conv2_b"] - params["bn2_m"]) * scale2 + params["bn2_b"])
    shift2 = jnp.tile(shift2.reshape(1, Cout), (4, 1)).reshape(4 * Cout, 1)
    shift2 = shift2.astype(jnp.float32)
    w2s = w2_t * scale2[None, :, None, None]       # scale the OUT channel
    W2 = jnp.zeros((4, Cout, 3, 3, Cout), jnp.float32)
    for p in (0, 1):
        for q in (0, 1):
            ph = 2 * p + q
            for dy in (0, 1):
                for dx in (0, 1):
                    ky, kx = 3 - p - 2 * dy, 3 - q - 2 * dx
                    W2 = W2.at[ph, :, p + dy, q + dx, :].set(w2s[:, :, ky, kx].T)
    w2 = W2.reshape(4 * Cout, 9 * Cout).astype(jnp.bfloat16)

    kernel = _make_fused_kernel(H, W, Cin, Cout, Wp, LV, LW, offs)
    out = pl.pallas_call(
        kernel,
        out_shape=jax.ShapeDtypeStruct((N, 4 * Cout, LV), jnp.bfloat16),
        grid=(N,),
        in_specs=[
            pl.BlockSpec((1, Cin, LW), lambda b: (b, 0, 0)),
            pl.BlockSpec((Cout, 9 * Cin), lambda b: (0, 0)),
            pl.BlockSpec((Cout, 1), lambda b: (0, 0)),
            pl.BlockSpec((4 * Cout, 9 * Cout), lambda b: (0, 0)),
            pl.BlockSpec((4 * Cout, 1), lambda b: (0, 0)),
        ],
        out_specs=pl.BlockSpec((1, 4 * Cout, LV), lambda b: (b, 0, 0)),
        scratch_shapes=[
            pltpu.VMEM((Cout, LW), jnp.bfloat16),      # zero-padded intermediate
            pltpu.VMEM((9 * Cin, LV), jnp.bfloat16),   # stacked stage-1 operand
            pltpu.VMEM((9 * Cout, LV), jnp.bfloat16),  # stacked stage-2 operand
        ],
        compiler_params=pltpu.CompilerParams(dimension_semantics=("parallel",)),
    )(xflat, w1, shift1, w2, shift2)

    # ---- un-interleave phases, drop virtual-grid garbage columns (bf16 until
    #      the very end), -> NCHW fp32 ----
    out = out[..., :S2].reshape(N, 2, 2, Cout, H, Wp)[..., :W]   # (N,p,q,C,H,W)
    out = jnp.transpose(out, (0, 3, 4, 1, 5, 2))                 # (N,C,H,p,W,q)
    return out.reshape(N, Cout, 2 * H, 2 * W).astype(jnp.float32)


# --------------------------- NumPy reference -------------------------------- #
def _ref_forward(x_nchw, params):
    p = {k: np.asarray(v, np.float32) for k, v in params.items()}
    x = np.asarray(x_nchw, np.float32)
    N, Cin, H, W = x.shape
    w1 = p["conv1_w"]
    Cout = w1.shape[0]

    # Conv2d 3x3 s1 p1, bias=False (NHWC for convenience).
    xh = np.transpose(x, (0, 2, 3, 1))
    xpad = np.pad(xh, ((0, 0), (1, 1), (1, 1), (0, 0)))
    y = np.zeros((N, H, W, Cout), np.float32)
    for ky in range(3):
        for kx in range(3):
            y += xpad[:, ky:ky + H, kx:kx + W, :] @ w1[:, :, ky, kx].T
    y = (y - p["bn1_m"]) / np.sqrt(p["bn1_v"] + BN_EPS) * p["bn1_g"] + p["bn1_b"]
    y = np.maximum(y, 0.0)

    # ConvTranspose2d 4x4 s2 p1 (+bias), scatter form (PyTorch semantics).
    w2 = p["conv2_w"]                                    # (in, out, kH, kW)
    Ho, Wo = 2 * H, 2 * W
    z = np.zeros((N, Ho, Wo, Cout), np.float32)
    for iy in range(H):
        for ix in range(W):
            for ky in range(4):
                for kx in range(4):
                    oy, ox = 2 * iy + ky - 1, 2 * ix + kx - 1
                    if 0 <= oy < Ho and 0 <= ox < Wo:
                        z[:, oy, ox, :] += y[:, iy, ix, :] @ w2[:, :, ky, kx]
    z += p["conv2_b"]
    z = (z - p["bn2_m"]) / np.sqrt(p["bn2_v"] + BN_EPS) * p["bn2_g"] + p["bn2_b"]
    z = np.maximum(z, 0.0)
    return np.transpose(z, (0, 3, 1, 2))                 # NCHW


# --------------------------------- main ------------------------------------- #
if __name__ == "__main__":
    inplanes, outplanes = 4, 8
    N, H, W = 2, 16, 16          # input 16x16 -> output 32x32 (upsample x2)

    key = jax.random.PRNGKey(0)
    ks = jax.random.split(key, 12)
    params = {
        # Conv2d(inplanes, outplanes, 3, s=1, p=1, bias=False): (out, in, kH, kW)
        "conv1_w": jax.random.normal(ks[0], (outplanes, inplanes, 3, 3), jnp.float32) * 0.1,
        "bn1_g": 1.0 + 0.1 * jax.random.normal(ks[1], (outplanes,), jnp.float32),
        "bn1_b": 0.1 * jax.random.normal(ks[2], (outplanes,), jnp.float32),
        "bn1_m": 0.1 * jax.random.normal(ks[3], (outplanes,), jnp.float32),
        "bn1_v": jax.random.uniform(ks[4], (outplanes,), jnp.float32, 0.5, 1.5),
        # ConvTranspose2d(outplanes, outplanes, 4, s=2, p=1): (in, out, kH, kW) + bias
        "conv2_w": jax.random.normal(ks[5], (outplanes, outplanes, 4, 4), jnp.float32) * 0.1,
        "conv2_b": jax.random.normal(ks[6], (outplanes,), jnp.float32) * 0.1,
        "bn2_g": 1.0 + 0.1 * jax.random.normal(ks[7], (outplanes,), jnp.float32),
        "bn2_b": 0.1 * jax.random.normal(ks[8], (outplanes,), jnp.float32),
        "bn2_m": 0.1 * jax.random.normal(ks[9], (outplanes,), jnp.float32),
        "bn2_v": jax.random.uniform(ks[10], (outplanes,), jnp.float32, 0.5, 1.5),
    }
    x = jax.random.normal(ks[11], (N, inplanes, H, W), jnp.float32)

    out = jax.jit(basic_block_forward)(x, params)
    out = jax.block_until_ready(out)
    assert out.shape == (N, outplanes, 2 * H, 2 * W)

    ref = _ref_forward(x, params)
    # bf16 weights/intermediate/output (fp32 MXU accumulation) -> a few e-2 abs.
    np.testing.assert_allclose(np.asarray(out), ref, rtol=4e-2, atol=4e-2)

    print("KERNEL_OK")
</pallas_src>

<mosaic_0001>
module attributes {stable_mosaic.version = 11 : i64} {
  func.func @kernel(%arg0: i32, %arg1: memref<1x4x512xbf16, #tpu.memory_space<vmem>>, %arg2: memref<8x36xbf16, #tpu.memory_space<vmem>>, %arg3: memref<8x1xf32, #tpu.memory_space<vmem>>, %arg4: memref<32x72xbf16, #tpu.memory_space<vmem>>, %arg5: memref<32x1xf32, #tpu.memory_space<vmem>>, %arg6: memref<1x32x384xbf16, #tpu.memory_space<vmem>>, %arg7: memref<8x512xbf16, #tpu.memory_space<vmem>>, %arg8: memref<36x384xbf16, #tpu.memory_space<vmem>>, %arg9: memref<72x384xbf16, #tpu.memory_space<vmem>>) attributes {dimension_semantics = [#tpu.dimension_semantics<parallel>], iteration_bounds = array<i64: 2>, scalar_prefetch = 0 : i64, scratch_operands = 3 : i64, tpu.core_type = #tpu.core_type<tc>, window_params = [{transform_indices = @transform_0, window_bounds = array<i64: 1, 4, 512>}, {pipeline_mode = #tpu.pipeline_mode<synchronous>, transform_indices = @transform_1, window_bounds = array<i64: 8, 36>}, {pipeline_mode = #tpu.pipeline_mode<synchronous>, transform_indices = @transform_2, window_bounds = array<i64: 8, 1>}, {pipeline_mode = #tpu.pipeline_mode<synchronous>, transform_indices = @transform_3, window_bounds = array<i64: 32, 72>}, {pipeline_mode = #tpu.pipeline_mode<synchronous>, transform_indices = @transform_4, window_bounds = array<i64: 32, 1>}, {transform_indices = @transform_5, window_bounds = array<i64: 1, 32, 384>}]} {
    %c0 = arith.constant 0 : index
    %c0_0 = arith.constant 0 : index
    %c0_1 = arith.constant 0 : index
    %0 = vector.load %arg1[%c0, %c0_0, %c0_1] : memref<1x4x512xbf16, #tpu.memory_space<vmem>>, vector<1x4x384xbf16>
    %1 = vector.shape_cast %0 : vector<1x4x384xbf16> to vector<4x384xbf16>
    %c0_2 = arith.constant 0 : index
    %c0_3 = arith.constant 0 : index
    %2 = vector.load %arg8[%c0_2, %c0_3] : memref<36x384xbf16, #tpu.memory_space<vmem>>, vector<4x384xbf16>
    tpu.vector_store %arg8[%c0_2, %c0_3], %1 {strides = array<i32>} : memref<36x384xbf16, #tpu.memory_space<vmem>>, vector<4x384xbf16>,
    %c0_4 = arith.constant 0 : index
    %c0_5 = arith.constant 0 : index
    %c1 = arith.constant 1 : index
    %3 = vector.load %arg1[%c0_4, %c0_5, %c1] : memref<1x4x512xbf16, #tpu.memory_space<vmem>>, vector<1x4x384xbf16>
    %4 = vector.shape_cast %3 : vector<1x4x384xbf16> to vector<4x384xbf16>
    %c4 = arith.constant 4 : index
    %c0_6 = arith.constant 0 : index
    %5 = vector.load %arg8[%c4, %c0_6] : memref<36x384xbf16, #tpu.memory_space<vmem>>, vector<4x384xbf16>
    tpu.vector_store %arg8[%c4, %c0_6], %4 {strides = array<i32>} : memref<36x384xbf16, #tpu.memory_space<vmem>>, vector<4x384xbf16>,
    %c0_7 = arith.constant 0 : index
    %c0_8 = arith.constant 0 : index
    %c2 = arith.constant 2 : index
    %6 = vector.load %arg1[%c0_7, %c0_8, %c2] : memref<1x4x512xbf16, #tpu.memory_space<vmem>>, vector<1x4x384xbf16>
    %7 = vector.shape_cast %6 : vector<1x4x384xbf16> to vector<4x384xbf16>
    %c8 = arith.constant 8 : index
    %c0_9 = arith.constant 0 : index
    %8 = vector.load %arg8[%c8, %c0_9] : memref<36x384xbf16, #tpu.memory_space<vmem>>, vector<4x384xbf16>
    tpu.vector_store %arg8[%c8, %c0_9], %7 {strides = array<i32>} : memref<36x384xbf16, #tpu.memory_space<vmem>>, vector<4x384xbf16>,
    %c0_10 = arith.constant 0 : index
    %c0_11 = arith.constant 0 : index
    %c18 = arith.constant 18 : index
    %9 = vector.load %arg1[%c0_10, %c0_11, %c18] : memref<1x4x512xbf16, #tpu.memory_space<vmem>>, vector<1x4x384xbf16>
    %10 = vector.shape_cast %9 : vector<1x4x384xbf16> to vector<4x384xbf16>
    %c12 = arith.constant 12 : index
    %c0_12 = arith.constant 0 : index
    %11 = vector.load %arg8[%c12, %c0_12] : memref<36x384xbf16, #tpu.memory_space<vmem>>, vector<4x384xbf16>
    tpu.vector_store %arg8[%c12, %c0_12], %10 {strides = array<i32>} : memref<36x384xbf16, #tpu.memory_space<vmem>>, vector<4x384xbf16>,
    %c0_13 = arith.constant 0 : index
    %c0_14 = arith.constant 0 : index
    %c19 = arith.constant 19 : index
    %12 = vector.load %arg1[%c0_13, %c0_14, %c19] : memref<1x4x512xbf16, #tpu.memory_space<vmem>>, vector<1x4x384xbf16>
    %13 = vector.shape_cast %12 : vector<1x4x384xbf16> to vector<4x384xbf16>
    %c16 = arith.constant 16 : index
    %c0_15 = arith.constant 0 : index
    %14 = vector.load %arg8[%c16, %c0_15] : memref<36x384xbf16, #tpu.memory_space<vmem>>, vector<4x384xbf16>
    tpu.vector_store %arg8[%c16, %c0_15], %13 {strides = array<i32>} : memref<36x384xbf16, #tpu.memory_space<vmem>>, vector<4x384xbf16>,
    %c0_16 = arith.constant 0 : index
    %c0_17 = arith.constant 0 : index
    %c20 = arith.constant 20 : index
    %15 = vector.load %arg1[%c0_16, %c0_17, %c20] : memref<1x4x512xbf16, #tpu.memory_space<vmem>>, vector<1x4x384xbf16>
    %16 = vector.shape_cast %15 : vector<1x4x384xbf16> to vector<4x384xbf16>
    %c20_18 = arith.constant 20 : index
    %c0_19 = arith.constant 0 : index
    %17 = vector.load %arg8[%c20_18, %c0_19] : memref<36x384xbf16, #tpu.memory_space<vmem>>, vector<4x384xbf16>
    tpu.vector_store %arg8[%c20_18, %c0_19], %16 {strides = array<i32>} : memref<36x384xbf16, #tpu.memory_space<vmem>>, vector<4x384xbf16>,
    %c0_20 = arith.constant 0 : index
    %c0_21 = arith.constant 0 : index
    %c36 = arith.constant 36 : index
    %18 = vector.load %arg1[%c0_20, %c0_21, %c36] : memref<1x4x512xbf16, #tpu.memory_space<vmem>>, vector<1x4x384xbf16>
    %19 = vector.shape_cast %18 : vector<1x4x384xbf16> to vector<4x384xbf16>
    %c24 = arith.constant 24 : index
    %c0_22 = arith.constant 0 : index
    %20 = vector.load %arg8[%c24, %c0_22] : memref<36x384xbf16, #tpu.memory_space<vmem>>, vector<4x384xbf16>
    tpu.vector_store %arg8[%c24, %c0_22], %19 {strides = array<i32>} : memref<36x384xbf16, #tpu.memory_space<vmem>>, vector<4x384xbf16>,
    %c0_23 = arith.constant 0 : index
    %c0_24 = arith.constant 0 : index
    %c37 = arith.constant 37 : index
    %21 = vector.load %arg1[%c0_23, %c0_24, %c37] : memref<1x4x512xbf16, #tpu.memory_space<vmem>>, vector<1x4x384xbf16>
    %22 = vector.shape_cast %21 : vector<1x4x384xbf16> to vector<4x384xbf16>
    %c28 = arith.constant 28 : index
    %c0_25 = arith.constant 0 : index
    %23 = vector.load %arg8[%c28, %c0_25] : memref<36x384xbf16, #tpu.memory_space<vmem>>, vector<4x384xbf16>
    tpu.vector_store %arg8[%c28, %c0_25], %22 {strides = array<i32>} : memref<36x384xbf16, #tpu.memory_space<vmem>>, vector<4x384xbf16>,
    %c0_26 = arith.constant 0 : index
    %c0_27 = arith.constant 0 : index
    %c38 = arith.constant 38 : index
    %24 = vector.load %arg1[%c0_26, %c0_27, %c38] : memref<1x4x512xbf16, #tpu.memory_space<vmem>>, vector<1x4x384xbf16>
    %25 = vector.shape_cast %24 : vector<1x4x384xbf16> to vector<4x384xbf16>
    %c32 = arith.constant 32 : index
    %c0_28 = arith.constant 0 : index
    %26 = vector.load %arg8[%c32, %c0_28] : memref<36x384xbf16, #tpu.memory_space<vmem>>, vector<4x384xbf16>
    tpu.vector_store %arg8[%c32, %c0_28], %25 {strides = array<i32>} : memref<36x384xbf16, #tpu.memory_space<vmem>>, vector<4x384xbf16>,
    %c0_29 = arith.constant 0 : index
    %c0_30 = arith.constant 0 : index
    %27 = vector.load %arg2[%c0_29, %c0_30] : memref<8x36xbf16, #tpu.memory_space<vmem>>, vector<8x36xbf16>
    %c0_31 = arith.constant 0 : index
    %c0_32 = arith.constant 0 : index
    %28 = vector.load %arg8[%c0_31, %c0_32] : memref<36x384xbf16, #tpu.memory_space<vmem>>, vector<36x384xbf16>
    %cst = arith.constant dense<0.000000e+00> : vector<8x384xf32>
    %29 = tpu.matmul %27, %28, %cst {dimension_numbers = #tpu.dot_dimension_numbers<[1], [0], [0], [1], [0, 0, 1, 1], [], []>} : vector<8x36xbf16>, vector<36x384xbf16>, vector<8x384xf32> -> vector<8x384xf32>
    %30 = tpu.iota {dimensions = array<i32: 1>} : vector<1x384xi32>
    %c19_i32 = arith.constant 19 : i32
    %31 = vector.broadcast %c19_i32 : i32 to vector<1x384xi32>
    %32 = arith.cmpi sge, %30, %31 : vector<1x384xi32>
    %c34_i32 = arith.constant 34 : i32
    %33 = vector.broadcast %c34_i32 : i32 to vector<1x384xi32>
    %34 = arith.cmpi sle, %30, %33 : vector<1x384xi32>
    %35 = arith.andi %32, %34 : vector<1x384xi1>
    %c37_i32 = arith.constant 37 : i32
    %36 = vector.broadcast %c37_i32 : i32 to vector<1x384xi32>
    %37 = arith.cmpi sge, %30, %36 : vector<1x384xi32>
    %c52_i32 = arith.constant 52 : i32
    %38 = vector.broadcast %c52_i32 : i32 to vector<1x384xi32>
    %39 = arith.cmpi sle, %30, %38 : vector<1x384xi32>
    %40 = arith.andi %37, %39 : vector<1x384xi1>
    %41 = arith.ori %35, %40 : vector<1x384xi1>
    %c55_i32 = arith.constant 55 : i32
    %42 = vector.broadcast %c55_i32 : i32 to vector<1x384xi32>
    %43 = arith.cmpi sge, %30, %42 : vector<1x384xi32>
    %c70_i32 = arith.constant 70 : i32
    %44 = vector.broadcast %c70_i32 : i32 to vector<1x384xi32>
    %45 = arith.cmpi sle, %30, %44 : vector<1x384xi32>
    %46 = arith.andi %43, %45 : vector<1x384xi1>
    %47 = arith.ori %41, %46 : vector<1x384xi1>
    %c73_i32 = arith.constant 73 : i32
    %48 = vector.broadcast %c73_i32 : i32 to vector<1x384xi32>
    %49 = arith.cmpi sge, %30, %48 : vector<1x384xi32>
    %c88_i32 = arith.constant 88 : i32
    %50 = vector.broadcast %c88_i32 : i32 to vector<1x384xi32>
    %51 = arith.cmpi sle, %30, %50 : vector<1x384xi32>
    %52 = arith.andi %49, %51 : vector<1x384xi1>
    %53 = arith.ori %47, %52 : vector<1x384xi1>
    %c91_i32 = arith.constant 91 : i32
    %54 = vector.broadcast %c91_i32 : i32 to vector<1x384xi32>
    %55 = arith.cmpi sge, %30, %54 : vector<1x384xi32>
    %c106_i32 = arith.constant 106 : i32
    %56 = vector.broadcast %c106_i32 : i32 to vector<1x384xi32>
    %57 = arith.cmpi sle, %30, %56 : vector<1x384xi32>
    %58 = arith.andi %55, %57 : vector<1x384xi1>
    %59 = arith.ori %53, %58 : vector<1x384xi1>
    %c109_i32 = arith.constant 109 : i32
    %60 = vector.broadcast %c109_i32 : i32 to vector<1x384xi32>
    %61 = arith.cmpi sge, %30, %60 : vector<1x384xi32>
    %c124_i32 = arith.constant 124 : i32
    %62 = vector.broadcast %c124_i32 : i32 to vector<1x384xi32>
    %63 = arith.cmpi sle, %30, %62 : vector<1x384xi32>
    %64 = arith.andi %61, %63 : vector<1x384xi1>
    %65 = arith.ori %59, %64 : vector<1x384xi1>
    %c127_i32 = arith.constant 127 : i32
    %66 = vector.broadcast %c127_i32 : i32 to vector<1x384xi32>
    %67 = arith.cmpi sge, %30, %66 : vector<1x384xi32>
    %c142_i32 = arith.constant 142 : i32
    %68 = vector.broadcast %c142_i32 : i32 to vector<1x384xi32>
    %69 = arith.cmpi sle, %30, %68 : vector<1x384xi32>
    %70 = arith.andi %67, %69 : vector<1x384xi1>
    %71 = arith.ori %65, %70 : vector<1x384xi1>
    %c145_i32 = arith.constant 145 : i32
    %72 = vector.broadcast %c145_i32 : i32 to vector<1x384xi32>
    %73 = arith.cmpi sge, %30, %72 : vector<1x384xi32>
    %c160_i32 = arith.constant 160 : i32
    %74 = vector.broadcast %c160_i32 : i32 to vector<1x384xi32>
    %75 = arith.cmpi sle, %30, %74 : vector<1x384xi32>
    %76 = arith.andi %73, %75 : vector<1x384xi1>
    %77 = arith.ori %71, %76 : vector<1x384xi1>
    %c163_i32 = arith.constant 163 : i32
    %78 = vector.broadcast %c163_i32 : i32 to vector<1x384xi32>
    %79 = arith.cmpi sge, %30, %78 : vector<1x384xi32>
    %c178_i32 = arith.constant 178 : i32
    %80 = vector.broadcast %c178_i32 : i32 to vector<1x384xi32>
    %81 = arith.cmpi sle, %30, %80 : vector<1x384xi32>
    %82 = arith.andi %79, %81 : vector<1x384xi1>
    %83 = arith.ori %77, %82 : vector<1x384xi1>
    %c181_i32 = arith.constant 181 : i32
    %84 = vector.broadcast %c181_i32 : i32 to vector<1x384xi32>
    %85 = arith.cmpi sge, %30, %84 : vector<1x384xi32>
    %c196_i32 = arith.constant 196 : i32
    %86 = vector.broadcast %c196_i32 : i32 to vector<1x384xi32>
    %87 = arith.cmpi sle, %30, %86 : vector<1x384xi32>
    %88 = arith.andi %85, %87 : vector<1x384xi1>
    %89 = arith.ori %83, %88 : vector<1x384xi1>
    %c199_i32 = arith.constant 199 : i32
    %90 = vector.broadcast %c199_i32 : i32 to vector<1x384xi32>
    %91 = arith.cmpi sge, %30, %90 : vector<1x384xi32>
    %c214_i32 = arith.constant 214 : i32
    %92 = vector.broadcast %c214_i32 : i32 to vector<1x384xi32>
    %93 = arith.cmpi sle, %30, %92 : vector<1x384xi32>
    %94 = arith.andi %91, %93 : vector<1x384xi1>
    %95 = arith.ori %89, %94 : vector<1x384xi1>
    %c217_i32 = arith.constant 217 : i32
    %96 = vector.broadcast %c217_i32 : i32 to vector<1x384xi32>
    %97 = arith.cmpi sge, %30, %96 : vector<1x384xi32>
    %c232_i32 = arith.constant 232 : i32
    %98 = vector.broadcast %c232_i32 : i32 to vector<1x384xi32>
    %99 = arith.cmpi sle, %30, %98 : vector<1x384xi32>
    %100 = arith.andi %97, %99 : vector<1x384xi1>
    %101 = arith.ori %95, %100 : vector<1x384xi1>
    %c235_i32 = arith.constant 235 : i32
    %102 = vector.broadcast %c235_i32 : i32 to vector<1x384xi32>
    %103 = arith.cmpi sge, %30, %102 : vector<1x384xi32>
    %c250_i32 = arith.constant 250 : i32
    %104 = vector.broadcast %c250_i32 : i32 to vector<1x384xi32>
    %105 = arith.cmpi sle, %30, %104 : vector<1x384xi32>
    %106 = arith.andi %103, %105 : vector<1x384xi1>
    %107 = arith.ori %101, %106 : vector<1x384xi1>
    %c253_i32 = arith.constant 253 : i32
    %108 = vector.broadcast %c253_i32 : i32 to vector<1x384xi32>
    %109 = arith.cmpi sge, %30, %108 : vector<1x384xi32>
    %c268_i32 = arith.constant 268 : i32
    %110 = vector.broadcast %c268_i32 : i32 to vector<1x384xi32>
    %111 = arith.cmpi sle, %30, %110 : vector<1x384xi32>
    %112 = arith.andi %109, %111 : vector<1x384xi1>
    %113 = arith.ori %107, %112 : vector<1x384xi1>
    %c271_i32 = arith.constant 271 : i32
    %114 = vector.broadcast %c271_i32 : i32 to vector<1x384xi32>
    %115 = arith.cmpi sge, %30, %114 : vector<1x384xi32>
    %c286_i32 = arith.constant 286 : i32
    %116 = vector.broadcast %c286_i32 : i32 to vector<1x384xi32>
    %117 = arith.cmpi sle, %30, %116 : vector<1x384xi32>
    %118 = arith.andi %115, %117 : vector<1x384xi1>
    %119 = arith.ori %113, %118 : vector<1x384xi1>
    %c289_i32 = arith.constant 289 : i32
    %120 = vector.broadcast %c289_i32 : i32 to vector<1x384xi32>
    %121 = arith.cmpi sge, %30, %120 : vector<1x384xi32>
    %c304_i32 = arith.constant 304 : i32
    %122 = vector.broadcast %c304_i32 : i32 to vector<1x384xi32>
    %123 = arith.cmpi sle, %30, %122 : vector<1x384xi32>
    %124 = arith.andi %121, %123 : vector<1x384xi1>
    %125 = arith.ori %119, %124 : vector<1x384xi1>
    %126 = arith.extui %125 : vector<1x384xi1> to vector<1x384xi32>
    %127 = arith.sitofp %126 : vector<1x384xi32> to vector<1x384xf32>
    %c0_33 = arith.constant 0 : index
    %c0_34 = arith.constant 0 : index
    %128 = vector.load %arg3[%c0_33, %c0_34] : memref<8x1xf32, #tpu.memory_space<vmem>>, vector<8x1xf32>
    %129 = vector.broadcast %128 : vector<8x1xf32> to vector<8x384xf32>
    %130 = arith.addf %29, %129 : vector<8x384xf32>
    %cst_35 = arith.constant 0.000000e+00 : f32
    %131 = vector.broadcast %cst_35 : f32 to vector<8x384xf32>
    %132 = arith.maximumf %130, %131 : vector<8x384xf32>
    %133 = vector.broadcast %127 : vector<1x384xf32> to vector<8x384xf32>
    %134 = arith.mulf %132, %133 : vector<8x384xf32>
    %135 = arith.truncf %134 : vector<8x384xf32> to vector<8x384xbf16>
    %c0_36 = arith.constant 0 : index
    %c0_37 = arith.constant 0 : index
    %136 = vector.load %arg7[%c0_36, %c0_37] : memref<8x512xbf16, #tpu.memory_space<vmem>>, vector<8x384xbf16>
    tpu.vector_store %arg7[%c0_36, %c0_37], %135 {strides = array<i32>} : memref<8x512xbf16, #tpu.memory_space<vmem>>, vector<8x384xbf16>,
    %cst_38 = arith.constant 0.000000e+00 : bf16
    %137 = vector.broadcast %cst_38 : bf16 to vector<8x128xbf16>
    %c0_39 = arith.constant 0 : index
    %c384 = arith.constant 384 : index
    %138 = vector.load %arg7[%c0_39, %c384] : memref<8x512xbf16, #tpu.memory_space<vmem>>, vector<8x128xbf16>
    tpu.vector_store %arg7[%c0_39, %c384], %137 {strides = array<i32>} : memref<8x512xbf16, #tpu.memory_space<vmem>>, vector<8x128xbf16>,
    %c0_40 = arith.constant 0 : index
    %c0_41 = arith.constant 0 : index
    %139 = vector.load %arg7[%c0_40, %c0_41] : memref<8x512xbf16, #tpu.memory_space<vmem>>, vector<8x384xbf16>
    %c0_42 = arith.constant 0 : index
    %c0_43 = arith.constant 0 : index
    %140 = vector.load %arg9[%c0_42, %c0_43] : memref<72x384xbf16, #tpu.memory_space<vmem>>, vector<8x384xbf16>
    tpu.vector_store %arg9[%c0_42, %c0_43], %139 {strides = array<i32>} : memref<72x384xbf16, #tpu.memory_space<vmem>>, vector<8x384xbf16>,
    %c0_44 = arith.constant 0 : index
    %c1_45 = arith.constant 1 : index
    %141 = vector.load %arg7[%c0_44, %c1_45] : memref<8x512xbf16, #tpu.memory_space<vmem>>, vector<8x384xbf16>
    %c8_46 = arith.constant 8 : index
    %c0_47 = arith.constant 0 : index
    %142 = vector.load %arg9[%c8_46, %c0_47] : memref<72x384xbf16, #tpu.memory_space<vmem>>, vector<8x384xbf16>
    tpu.vector_store %arg9[%c8_46, %c0_47], %141 {strides = array<i32>} : memref<72x384xbf16, #tpu.memory_space<vmem>>, vector<8x384xbf16>,
    %c0_48 = arith.constant 0 : index
    %c2_49 = arith.constant 2 : index
    %143 = vector.load %arg7[%c0_48, %c2_49] : memref<8x512xbf16, #tpu.memory_space<vmem>>, vector<8x384xbf16>
    %c16_50 = arith.constant 16 : index
    %c0_51 = arith.constant 0 : index
    %144 = vector.load %arg9[%c16_50, %c0_51] : memref<72x384xbf16, #tpu.memory_space<vmem>>, vector<8x384xbf16>
    tpu.vector_store %arg9[%c16_50, %c0_51], %143 {strides = array<i32>} : memref<72x384xbf16, #tpu.memory_space<vmem>>, vector<8x384xbf16>,
    %c0_52 = arith.constant 0 : index
    %c18_53 = arith.constant 18 : index
    %145 = vector.load %arg7[%c0_52, %c18_53] : memref<8x512xbf16, #tpu.memory_space<vmem>>, vector<8x384xbf16>
    %c24_54 = arith.constant 24 : index
    %c0_55 = arith.constant 0 : index
    %146 = vector.load %arg9[%c24_54, %c0_55] : memref<72x384xbf16, #tpu.memory_space<vmem>>, vector<8x384xbf16>
    tpu.vector_store %arg9[%c24_54, %c0_55], %145 {strides = array<i32>} : memref<72x384xbf16, #tpu.memory_space<vmem>>, vector<8x384xbf16>,
    %c0_56 = arith.constant 0 : index
    %c19_57 = arith.constant 19 : index
    %147 = vector.load %arg7[%c0_56, %c19_57] : memref<8x512xbf16, #tpu.memory_space<vmem>>, vector<8x384xbf16>
    %c32_58 = arith.constant 32 : index
    %c0_59 = arith.constant 0 : index
    %148 = vector.load %arg9[%c32_58, %c0_59] : memref<72x384xbf16, #tpu.memory_space<vmem>>, vector<8x384xbf16>
    tpu.vector_store %arg9[%c32_58, %c0_59], %147 {strides = array<i32>} : memref<72x384xbf16, #tpu.memory_space<vmem>>, vector<8x384xbf16>,
    %c0_60 = arith.constant 0 : index
    %c20_61 = arith.constant 20 : index
    %149 = vector.load %arg7[%c0_60, %c20_61] : memref<8x512xbf16, #tpu.memory_space<vmem>>, vector<8x384xbf16>
    %c40 = arith.constant 40 : index
    %c0_62 = arith.constant 0 : index
    %150 = vector.load %arg9[%c40, %c0_62] : memref<72x384xbf16, #tpu.memory_space<vmem>>, vector<8x384xbf16>
    tpu.vector_store %arg9[%c40, %c0_62], %149 {strides = array<i32>} : memref<72x384xbf16, #tpu.memory_space<vmem>>, vector<8x384xbf16>,
    %c0_63 = arith.constant 0 : index
    %c36_64 = arith.constant 36 : index
    %151 = vector.load %arg7[%c0_63, %c36_64] : memref<8x512xbf16, #tpu.memory_space<vmem>>, vector<8x384xbf16>
    %c48 = arith.constant 48 : index
    %c0_65 = arith.constant 0 : index
    %152 = vector.load %arg9[%c48, %c0_65] : memref<72x384xbf16, #tpu.memory_space<vmem>>, vector<8x384xbf16>
    tpu.vector_store %arg9[%c48, %c0_65], %151 {strides = array<i32>} : memref<72x384xbf16, #tpu.memory_space<vmem>>, vector<8x384xbf16>,
    %c0_66 = arith.constant 0 : index
    %c37_67 = arith.constant 37 : index
    %153 = vector.load %arg7[%c0_66, %c37_67] : memref<8x512xbf16, #tpu.memory_space<vmem>>, vector<8x384xbf16>
    %c56 = arith.constant 56 : index
    %c0_68 = arith.constant 0 : index
    %154 = vector.load %arg9[%c56, %c0_68] : memref<72x384xbf16, #tpu.memory_space<vmem>>, vector<8x384xbf16>
    tpu.vector_store %arg9[%c56, %c0_68], %153 {strides = array<i32>} : memref<72x384xbf16, #tpu.memory_space<vmem>>, vector<8x384xbf16>,
    %c0_69 = arith.constant 0 : index
    %c38_70 = arith.constant 38 : index
    %155 = vector.load %arg7[%c0_69, %c38_70] : memref<8x512xbf16, #tpu.memory_space<vmem>>, vector<8x384xbf16>
    %c64 = arith.constant 64 : index
    %c0_71 = arith.constant 0 : index
    %156 = vector.load %arg9[%c64, %c0_71] : memref<72x384xbf16, #tpu.memory_space<vmem>>, vector<8x384xbf16>
    tpu.vector_store %arg9[%c64, %c0_71], %155 {strides = array<i32>} : memref<72x384xbf16, #tpu.memory_space<vmem>>, vector<8x384xbf16>,
    %c0_72 = arith.constant 0 : index
    %c0_73 = arith.constant 0 : index
    %157 = vector.load %arg4[%c0_72, %c0_73] : memref<32x72xbf16, #tpu.memory_space<vmem>>, vector<32x72xbf16>
    %c0_74 = arith.constant 0 : index
    %c0_75 = arith.constant 0 : index
    %158 = vector.load %arg9[%c0_74, %c0_75] : memref<72x384xbf16, #tpu.memory_space<vmem>>, vector<72x384xbf16>
    %cst_76 = arith.constant dense<0.000000e+00> : vector<32x384xf32>
    %159 = tpu.matmul %157, %158, %cst_76 {dimension_numbers = #tpu.dot_dimension_numbers<[1], [0], [0], [1], [0, 0, 1, 1], [], []>} : vector<32x72xbf16>, vector<72x384xbf16>, vector<32x384xf32> -> vector<32x384xf32>
    %c0_77 = arith.constant 0 : index
    %c0_78 = arith.constant 0 : index
    %160 = vector.load %arg5[%c0_77, %c0_78] : memref<32x1xf32, #tpu.memory_space<vmem>>, vector<32x1xf32>
    %161 = vector.broadcast %160 : vector<32x1xf32> to vector<32x384xf32>
    %162 = arith.addf %159, %161 : vector<32x384xf32>
    %cst_79 = arith.constant 0.000000e+00 : f32
    %163 = vector.broadcast %cst_79 : f32 to vector<32x384xf32>
    %164 = arith.maximumf %162, %163 : vector<32x384xf32>
    %165 = arith.truncf %164 : vector<32x384xf32> to vector<32x384xbf16>
    %c0_80 = arith.constant 0 : index
    %c0_81 = arith.constant 0 : index
    %c0_82 = arith.constant 0 : index
    %166 = vector.load %arg6[%c0_80, %c0_81, %c0_82] : memref<1x32x384xbf16, #tpu.memory_space<vmem>>, vector<1x32x384xbf16>
    %167 = vector.shape_cast %166 : vector<1x32x384xbf16> to vector<32x384xbf16>
    %168 = vector.shape_cast %165 : vector<32x384xbf16> to vector<1x32x384xbf16>
    tpu.vector_store %arg6[%c0_80, %c0_81, %c0_82], %168 {strides = array<i32>} : memref<1x32x384xbf16, #tpu.memory_space<vmem>>, vector<1x32x384xbf16>,
    return
  }
  func.func @transform_0(%arg0: i32) -> (i32, i32, i32) {
    %c0_i32 = arith.constant 0 : i32
    %c0_i32_0 = arith.constant 0 : i32
    %c0_i32_1 = arith.constant 0 : i32
    return %arg0, %c0_i32, %c0_i32_0 : i32, i32, i32
  }
  func.func @transform_1(%arg0: i32) -> (i32, i32) {
    %c0_i32 = arith.constant 0 : i32
    %c0_i32_0 = arith.constant 0 : i32
    %c0_i32_1 = arith.constant 0 : i32
    return %c0_i32, %c0_i32_0 : i32, i32
  }
  func.func @transform_2(%arg0: i32) -> (i32, i32) {
    %c0_i32 = arith.constant 0 : i32
    %c0_i32_0 = arith.constant 0 : i32
    %c0_i32_1 = arith.constant 0 : i32
    return %c0_i32, %c0_i32_0 : i32, i32
  }
  func.func @transform_3(%arg0: i32) -> (i32, i32) {
    %c0_i32 = arith.constant 0 : i32
    %c0_i32_0 = arith.constant 0 : i32
    %c0_i32_1 = arith.constant 0 : i32
    return %c0_i32, %c0_i32_0 : i32, i32
  }
  func.func @transform_4(%arg0: i32) -> (i32, i32) {
    %c0_i32 = arith.constant 0 : i32
    %c0_i32_0 = arith.constant 0 : i32
    %c0_i32_1 = arith.constant 0 : i32
    return %c0_i32, %c0_i32_0 : i32, i32
  }
  func.func @transform_5(%arg0: i32) -> (i32, i32, i32) {
    %c0_i32 = arith.constant 0 : i32
    %c0_i32_0 = arith.constant 0 : i32
    %c0_i32_1 = arith.constant 0 : i32
    return %arg0, %c0_i32, %c0_i32_0 : i32, i32, i32
  }
}

</mosaic_0001>

<llo_original>
// kernel: tile.6
$region0: #{tile.6}
  #allocation0 [shape = 's32[1]{0}', space=sflag, size = 0x4, scoped, tag = 'scoped memory for tile.6']
  %s0 = inlined_call_operand.vmem [shape: f32[8], index: 0, kind: input, shape index: {}]
  %s1 = inlined_call_operand.vmem [shape: f32[4,1,1,8], index: 1, kind: output, shape index: {}]
  // Predicated region
  $region2: #{tile.6} parent=0 // pred_check
    _
  $region3: #{tile.6} parent=0 // pred_check_branch
    %3 = sbr.rel (0) target = $region5
  $region4: #{tile.6} parent=0 // pred_region
    _
  $region5: #{tile.6} parent=0 // pred_fallthru
    _
  %v4 = vld [vmem:[%s0] ss:$0 sm:$0xff]
  %5 = vst [vmem:[%s1] sm:$0xf] %v4

// kernel: tile.0
$region0: #{tile.0}
  %s0 = inlined_call_operand.vmem [shape: f32[4,1,1,8], index: 0, kind: input, shape index: {}]
  %s1 = inlined_call_operand.vmem [shape: f32[32,1], index: 1, kind: output, shape index: {}]
  $region1: #{tile.0} parent=0
    #allocation0 [shape = 'u8[4096]{0}', space=vmem, size = 0x1000, scoped, tag = 'scoped mem for input reshape']
    %s3 = sshllo.u32 0, 4
    %v4 = vld [vmem:[%s0] sm:%s3]
    %5 = vst [vmem:[#allocation0] sm:%s3] %v4
    %v6 = vld [vmem:[#allocation0] sm:$0xf]
    %vm7 = vcmask 7168
    %8 = vst.msk [vmem:[%s1] ss:$8 sm:$0xf] %vm7, %v6
    %v9 = vld [vmem:[#allocation0] sm:$0xf]
    %10 = vrot.lane.b32.xlu0 %v9, 127
    %v11 = vpop.permute.xlu0 %10
    %vm12 = vcmask 7168
    %s13 = scalar_lea.vmem %s1, 1
    %14 = vst.msk [vmem:[%s13] ss:$8 sm:$0xf] %vm12, %v11
    %v15 = vld [vmem:[#allocation0] sm:$0xf]
    %16 = vrot.lane.b32.xlu0 %v15, 126
    %v17 = vpop.permute.xlu0 %16
    %vm18 = vcmask 7168
    %s19 = scalar_lea.vmem %s1, 2
    %20 = vst.msk [vmem:[%s19] ss:$8 sm:$0xf] %vm18, %v17
    %v21 = vld [vmem:[#allocation0] sm:$0xf]
    %22 = vrot.lane.b32.xlu0 %v21, 125
    %v23 = vpop.permute.xlu0 %22
    %vm24 = vcmask 7168
    %s25 = scalar_lea.vmem %s1, 3
    %26 = vst.msk [vmem:[%s25] ss:$8 sm:$0xf] %vm24, %v23
    %v27 = vld [vmem:[#allocation0] sm:$0xf]
    %28 = vrot.lane.b32.xlu0 %v27, 124
    %v29 = vpop.permute.xlu0 %28
    %vm30 = vcmask 7168
    %s31 = scalar_lea.vmem %s1, 4
    %32 = vst.msk [vmem:[%s31] ss:$8 sm:$0xf] %vm30, %v29
    %v33 = vld [vmem:[#allocation0] sm:$0xf]
    %34 = vrot.lane.b32.xlu0 %v33, 123
    %v35 = vpop.permute.xlu0 %34
    %vm36 = vcmask 7168
    %s37 = scalar_lea.vmem %s1, 5
    %38 = vst.msk [vmem:[%s37] ss:$8 sm:$0xf] %vm36, %v35
    %v39 = vld [vmem:[#allocation0] sm:$0xf]
    %40 = vrot.lane.b32.xlu0 %v39, 122
    %v41 = vpop.permute.xlu0 %40
    %vm42 = vcmask 7168
    %s43 = scalar_lea.vmem %s1, 6
    %44 = vst.msk [vmem:[%s43] ss:$8 sm:$0xf] %vm42, %v41
    %v45 = vld [vmem:[#allocation0] sm:$0xf]
    %46 = vrot.lane.b32.xlu0 %v45, 121
    %v47 = vpop.permute.xlu0 %46
    %vm48 = vcmask 7168
    %s49 = scalar_lea.vmem %s1, 7
    %50 = vst.msk [vmem:[%s49] ss:$8 sm:$0xf] %vm48, %v47

// kernel: basic_block_forward.1
$region0: #{basic_block_forward.1}
  #allocation0 [shape = 'u32[]', space=smem, size = 0x4, offset = 0x4, fixed_abs, tag = 'smem constant byte address 0x4 - core index']
  #allocation1 [shape = 'u32[144,128]{1,0:T(1,128)}', space=vmem, size = 0x12000, scoped, tag = 'internal scratch']
  #allocation2 [shape = 'bf16[8,512]{1,0:T(8,128)(2,1)}', space=vmem, size = 0x2000, scoped, tag = 'scratch operand']
  #allocation3 [shape = 'bf16[36,384]{1,0:T(8,128)(2,1)}', space=vmem, size = 0x7800, scoped, tag = 'scratch operand']
  #allocation4 [shape = 'bf16[72,384]{1,0:T(8,128)(2,1)}', space=vmem, size = 0xd800, scoped, tag = 'scratch operand']
  %s0 = inlined_call_operand.vmem [shape: bf16[2,4,512], index: 0, kind: input, shape index: {}]
  %s1 = inlined_call_operand.vmem [shape: bf16[8,36], index: 1, kind: input, shape index: {}]
  %s2 = inlined_call_operand.vmem [shape: f32[8,1], index: 2, kind: input, shape index: {}]
  %s3 = inlined_call_operand.vmem [shape: bf16[32,72], index: 3, kind: input, shape index: {}]
  %s4 = inlined_call_operand.vmem [shape: f32[32,1], index: 4, kind: input, shape index: {}]
  %s5 = inlined_call_operand.vmem [shape: bf16[2,32,384], index: 5, kind: output, shape index: {}]
  %s6 = sld [smem:[#allocation0]]
  $region53: #{basic_block_forward.1} parent=0
    _
  %s8 = ssub.s32 1, %s6
  %s9 = scalar_select 0, %s8, %s6
  loop: start=0, step=1, limit=4
  $region2: #{basic_block_forward.1} parent=0 // loop_pre_header
    _
  $region3: #{basic_block_forward.1} parent=0 // loop_header
    %s11 = sphi 0, %s15
    %p12 = scmp.ge.s32.totalorder %s11, 4
    %s21 = sphi 0, %s23
    %s24 = sphi 0, %s21
    %s25 = sphi 0, %s24
    %s41 = sphi 0, %s25
    %s45 = sphi 0, %s45
    %s47 = sphi 0, %s45
    %s48 = sphi 0, %s47
    %s62 = sphi 0, %s48
    %s66 = sphi 0, %s66
    %s68 = sphi 0, %s66
    %s69 = sphi 0, %s68
    %s83 = sphi 0, %s69
    %s87 = sphi 0, %s87
    %s89 = sphi 0, %s87
    %s90 = sphi 0, %s89
    %s104 = sphi 0, %s90
    %s108 = sphi 0, %s108
    %s110 = sphi 0, %s108
    %s111 = sphi 0, %s110
    %s125 = sphi 0, %s111
    %s131 = sphi 0, %s133
    %s134 = sphi 0, %s131
    %s135 = sphi 0, %s134
    %s151 = sphi 0, %s135
  $region4: #{basic_block_forward.1} parent=0 // loop_header_branch
    %14 = sbr.rel (%p12) target = $region8
  $region5: #{basic_block_forward.1} parent=0 // loop_body
    %s16 = ssub.s32 %s11, 1
    %s17 = ssub.s32 %s11, 2
    %s18 = sadd.s32 %s11, 1
    %s19 = ssub.s32 %s11, %s18
    %p20 = scmp.eq.s32.totalorder %s19, 0
    %s22 = sadd.s32 %s21, 1
    %s23 = scalar_select %p20, %s21, %s22
    %p26 = pneg %p20
    %p27 = scmp.eq.s32.totalorder %s11, 1
    %p28 = por %p26, %p27
    %p29 = scmp.ne.s32.totalorder %s21, %s24
    %p30 = scmp.eq.s32.totalorder %s11, 0
    %p31 = por %p29, %p30
    %p32 = scmp.ne.s32.totalorder %s21, %s24
    %p33 = scmp.eq.s32.totalorder %s16, 1
    %p34 = por %p32, %p33
    %p35 = scmp.ne.s32.totalorder %s24, %s25
    %p36 = scmp.eq.s32.totalorder %s16, 0
    %p37 = por %p35, %p36
    %p38 = scmp.ne.s32.totalorder %s24, %s25
    %p39 = scmp.eq.s32.totalorder %s17, 1
    %p40 = por %p38, %p39
    %p42 = scmp.ne.s32.totalorder %s25, %s41
    %p43 = scmp.eq.s32.totalorder %s17, 0
    %p44 = por %p42, %p43
    %s46 = sadd.s32 %s45, 1
    %p49 = scmp.eq.s32.totalorder %s11, 1
    %p50 = scmp.ne.s32.totalorder %s45, %s47
    %p51 = scmp.eq.s32.totalorder %s11, 0
    %p52 = por %p50, %p51
    %p53 = scmp.ne.s32.totalorder %s45, %s47
    %p54 = scmp.eq.s32.totalorder %s16, 1
    %p55 = por %p53, %p54
    %p56 = scmp.ne.s32.totalorder %s47, %s48
    %p57 = scmp.eq.s32.totalorder %s16, 0
    %p58 = por %p56, %p57
    %p59 = scmp.ne.s32.totalorder %s47, %s48
    %p60 = scmp.eq.s32.totalorder %s17, 1
    %p61 = por %p59, %p60
    %p63 = scmp.ne.s32.totalorder %s48, %s62
    %p64 = scmp.eq.s32.totalorder %s17, 0
    %p65 = por %p63, %p64
    %s67 = sadd.s32 %s66, 1
    %p70 = scmp.eq.s32.totalorder %s11, 1
    %p71 = scmp.ne.s32.totalorder %s66, %s68
    %p72 = scmp.eq.s32.totalorder %s11, 0
    %p73 = por %p71, %p72
    %p74 = scmp.ne.s32.totalorder %s66, %s68
    %p75 = scmp.eq.s32.totalorder %s16, 1
    %p76 = por %p74, %p75
    %p77 = scmp.ne.s32.totalorder %s68, %s69
    %p78 = scmp.eq.s32.totalorder %s16, 0
    %p79 = por %p77, %p78
    %p80 = scmp.ne.s32.totalorder %s68, %s69
    %p81 = scmp.eq.s32.totalorder %s17, 1
    %p82 = por %p80, %p81
    %p84 = scmp.ne.s32.totalorder %s69, %s83
    %p85 = scmp.eq.s32.totalorder %s17, 0
    %p86 = por %p84, %p85
    %s88 = sadd.s32 %s87, 1
    %p91 = scmp.eq.s32.totalorder %s11, 1
    %p92 = scmp.ne.s32.totalorder %s87, %s89
    %p93 = scmp.eq.s32.totalorder %s11, 0
    %p94 = por %p92, %p93
    %p95 = scmp.ne.s32.totalorder %s87, %s89
    %p96 = scmp.eq.s32.totalorder %s16, 1
    %p97 = por %p95, %p96
    %p98 = scmp.ne.s32.totalorder %s89, %s90
    %p99 = scmp.eq.s32.totalorder %s16, 0
    %p100 = por %p98, %p99
    %p101 = scmp.ne.s32.totalorder %s89, %s90
    %p102 = scmp.eq.s32.totalorder %s17, 1
    %p103 = por %p101, %p102
    %p105 = scmp.ne.s32.totalorder %s90, %s104
    %p106 = scmp.eq.s32.totalorder %s17, 0
    %p107 = por %p105, %p106
    %s109 = sadd.s32 %s108, 1
    %p112 = scmp.eq.s32.totalorder %s11, 1
    %p113 = scmp.ne.s32.totalorder %s108, %s110
    %p114 = scmp.eq.s32.totalorder %s11, 0
    %p115 = por %p113, %p114
    %p116 = scmp.ne.s32.totalorder %s108, %s110
    %p117 = scmp.eq.s32.totalorder %s16, 1
    %p118 = por %p116, %p117
    %p119 = scmp.ne.s32.totalorder %s110, %s111
    %p120 = scmp.eq.s32.totalorder %s16, 0
    %p121 = por %p119, %p120
    %p122 = scmp.ne.s32.totalorder %s110, %s111
    %p123 = scmp.eq.s32.totalorder %s17, 1
    %p124 = por %p122, %p123
    %p126 = scmp.ne.s32.totalorder %s111, %s125
    %p127 = scmp.eq.s32.totalorder %s17, 0
    %p128 = por %p126, %p127
    %s129 = ssub.s32 %s11, %s18
    %p130 = scmp.eq.s32.totalorder %s129, 0
    %s132 = sadd.s32 %s131, 1
    %s133 = scalar_select %p130, %s131, %s132
    %p136 = pneg %p130
    %p137 = scmp.eq.s32.totalorder %s11, 1
    %p138 = por %p136, %p137
    %p139 = scmp.ne.s32.totalorder %s131, %s134
    %p140 = scmp.eq.s32.totalorder %s11, 0
    %p141 = por %p139, %p140
    %p142 = scmp.ne.s32.totalorder %s131, %s134
    %p143 = scmp.eq.s32.totalorder %s16, 1
    %p144 = por %p142, %p143
    %p145 = scmp.ne.s32.totalorder %s134, %s135
    %p146 = scmp.eq.s32.totalorder %s16, 0
    %p147 = por %p145, %p146
    %p148 = scmp.ne.s32.totalorder %s134, %s135
    %p149 = scmp.eq.s32.totalorder %s17, 1
    %p150 = por %p148, %p149
    %p152 = scmp.ne.s32.totalorder %s135, %s151
    %p153 = scmp.eq.s32.totalorder %s17, 0
    %p154 = por %p152, %p153
    %p155 = scmp.le.s32.totalorder 1, %s11
    %p156 = scmp.lt.s32.totalorder %s11, 3
    %p157 = pnand %p155, %p156
    %p158 = pneg %p157
    // Predicated region
    $region9: #{basic_block_forward.1} parent=5 // pred_check
      _
    $region10: #{basic_block_forward.1} parent=5 // pred_check_branch
      %160 = sbr.rel (%p157) target = $region12
    $region11: #{basic_block_forward.1} parent=5 // pred_region
      %s161 = ssub.s32 %s11, 1
      // Predicated region
      $region13: #{basic_block_forward.1} parent=11 // pred_check
        %p162 = pneg %p58
      $region14: #{basic_block_forward.1} parent=11 // pred_check_branch
        %164 = sbr.rel (%p162) target = $region16
      $region15: #{basic_block_forward.1} parent=11 // pred_region
        _
      $region16: #{basic_block_forward.1} parent=11 // pred_fallthru
        _
      // Predicated region
      $region17: #{basic_block_forward.1} parent=11 // pred_check
        %p165 = pneg %p79
      $region18: #{basic_block_forward.1} parent=11 // pred_check_branch
        %167 = sbr.rel (%p165) target = $region20
      $region19: #{basic_block_forward.1} parent=11 // pred_region
        _
      $region20: #{basic_block_forward.1} parent=11 // pred_fallthru
        _
      // Predicated region
      $region21: #{basic_block_forward.1} parent=11 // pred_check
        %p168 = pneg %p100
      $region22: #{basic_block_forward.1} parent=11 // pred_check_branch
        %170 = sbr.rel (%p168) target = $region24
      $region23: #{basic_block_forward.1} parent=11 // pred_region
        _
      $region24: #{basic_block_forward.1} parent=11 // pred_fallthru
        _
      // Predicated region
      $region25: #{basic_block_forward.1} parent=11 // pred_check
        %p171 = pneg %p121
      $region26: #{basic_block_forward.1} parent=11 // pred_check_branch
        %173 = sbr.rel (%p171) target = $region28
      $region27: #{basic_block_forward.1} parent=11 // pred_region
        _
      $region28: #{basic_block_forward.1} parent=11 // pred_fallthru
        _
    $region12: #{basic_block_forward.1} parent=5 // pred_fallthru
      _
    %p174 = scmp.lt.s32.totalorder %s11, 2
    // Predicated region
    $region29: #{basic_block_forward.1} parent=5 // pred_check
      %p175 = pneg %p174
    $region30: #{basic_block_forward.1} parent=5 // pred_check_branch
      %177 = sbr.rel (%p175) target = $region32
    $region31: #{basic_block_forward.1} parent=5 // pred_region
      // Predicated region
      $region33: #{basic_block_forward.1} parent=31 // pred_check
        %p178 = pneg %p31
      $region34: #{basic_block_forward.1} parent=31 // pred_check_branch
        %180 = sbr.rel (%p178) target = $region36
      $region35: #{basic_block_forward.1} parent=31 // pred_region
        %p181 = scmp.lt.s32.totalorder %s11, 1
        %s182 = scalar_select %p181, %s11, 1
        %s183 = smul.addr %s182, 4
        %s184 = smul.addr %s183, 2
        %s185 = scalar_lea.vmem %s0, %s184
      $region36: #{basic_block_forward.1} parent=31 // pred_fallthru
        _
    $region32: #{basic_block_forward.1} parent=5 // pred_fallthru
      _
    %p186 = scmp.le.s32.totalorder 1, %s11
    %p187 = scmp.lt.s32.totalorder %s11, 3
    %p188 = pnand %p186, %p187
    %p189 = pneg %p188
    // Predicated region
    $region37: #{basic_block_forward.1} parent=5 // pred_check
      _
    $region38: #{basic_block_forward.1} parent=5 // pred_check_branch
      %191 = sbr.rel (%p188) target = $region40
    $region39: #{basic_block_forward.1} parent=5 // pred_region
      %s192 = ssub.s32 %s11, 1
      %p193 = scmp.lt.s32.totalorder %s16, 1
      %s194 = scalar_select %p193, %s16, 1
      %s195 = smul.addr %s194, 4
      %s196 = smul.addr %s195, 2
      %s197 = scalar_lea.vmem %s0, %s196
      %p198 = pneg %p37
      %p199 = pneg %p34
      %p200 = pneg %p58
      %p201 = pneg %p55
      %p202 = pneg %p79
      %p203 = pneg %p76
      %p204 = pneg %p100
      %p205 = pneg %p97
      %p206 = pneg %p121
      %p207 = pneg %p118
      %p208 = pneg %p147
      %p209 = pneg %p144
      %p210 = scmp.lt.s32.totalorder %s16, 1
      %s211 = scalar_select %p210, %s16, 1
      %s212 = smul.addr %s211, 12
      %s213 = smul.addr %s212, 4
      %s214 = scalar_lea.vmem %s5, %s213
      %p215 = scmp.lt.s32.totalorder %s16, 1
      %s216 = scalar_select %p215, %s16, 1
      %s217 = smul.addr %s216, 4
      %s218 = smul.addr %s217, 2
      %s219 = scalar_lea.vmem %s0, %s218
      %p220 = scmp.lt.s32.totalorder %s16, 1
      %s221 = scalar_select %p220, %s16, 1
      %s222 = smul.addr %s221, 12
      %s223 = smul.addr %s222, 4
      %s224 = scalar_lea.vmem %s5, %s223
      %v226 = vld [vmem:[%s219] sm:$0x3f]
      %v228 = vcombine.high %v226, %v226
      %v230 = vunpack.c.l.s4 1983009808
      %v231 = vunpack.c.0.s8 %v230
      %v232 = vlaneseq
      %v233 = vshrl.u32 %v232, 7
      %v234 = vsub.s32 %v231, %v233
      %v235 = vrot.slane %v226, %v234
      %v237 = vunpack.c.l.s4 1983009808
      %v238 = vunpack.c.0.s8 %v237
      %v239 = vlaneseq
      %v240 = vshrl.u32 %v239, 7
      %v241 = vsub.s32 %v238, %v240
      %v242 = vrot.slane %v228, %v241
      %245 = vst [vmem:[#allocation3] sm:$0x33] %v235
      %246 = vst [vmem:[#allocation3 + $0x8] sm:$0x3] %v242
      %v247 = vld [vmem:[%s219] sm:$0xff]
      %v249 = vcombine.low %v247, %v247
      %v251 = vunpack.c.l.s4 1983009808
      %v252 = vunpack.c.0.s8 %v251
      %v253 = vlaneseq
      %v254 = vshrl.u32 %v253, 7
      %v255 = vsub.s32 %v252, %v254
      %v256 = vrot.slane %v249, %v255
      %v258 = vunpack.c.l.s4 1983009808
      %v259 = vunpack.c.0.s8 %v258
      %v260 = vlaneseq
      %v261 = vshrl.u32 %v260, 7
      %v262 = vsub.s32 %v259, %v261
      %v263 = vrot.slane %v247, %v262
      %264 = vrot.lane.b32.xlu0 %v256, 127
      %v265 = vpop.permute.xlu0 %264
      %266 = vrot.lane.b32.xlu0 %v263, 127
      %v267 = vpop.permute.xlu0 %266
      %v268 = vrot.slane %v265, 4
      %v269 = vrot.slane %v267, 4
      %vm270 = vcmask 1043456
      %v271 = vsel %vm270, %v268, %v269
      %vm272 = vcmask 1039360
      %v273 = vsel %vm272, %v265, %v271
      %v274 = vsel %vm272, %v267, %v269
      %277 = vst [vmem:[#allocation3] sm:$0xcc] %v273
      %278 = vst [vmem:[#allocation3 + $0x8] sm:$0xc] %v274
      %v279 = vld [vmem:[%s219] sm:$0xff]
      %v281 = vcombine.high %v279, %v279
      %v283 = vunpack.c.l.s4 1983009808
      %v284 = vunpack.c.0.s8 %v283
      %v285 = vlaneseq
      %v286 = vshrl.u32 %v285, 7
      %v287 = vsub.s32 %v284, %v286
      %v288 = vrot.slane %v279, %v287
      %v290 = vunpack.c.l.s4 1983009808
      %v291 = vunpack.c.0.s8 %v290
      %v292 = vlaneseq
      %v293 = vshrl.u32 %v292, 7
      %v294 = vsub.s32 %v291, %v293
      %v295 = vrot.slane %v281, %v294
      %296 = vrot.lane.b32.xlu0 %v288, 126
      %v297 = vpop.permute.xlu0 %296
      %298 = vrot.lane.b32.xlu0 %v295, 126
      %v299 = vpop.permute.xlu0 %298
      %v300 = vrot.slane %v297, 4
      %v301 = vrot.slane %v299, 4
      %v302 = vsel %vm270, %v300, %v301
      %vm303 = vcmask 1031168
      %v304 = vsel %vm303, %v297, %v302
      %v305 = vsel %vm303, %v299, %v301
      %308 = vst [vmem:[#allocation3 + $0xc] sm:$0x33] %v304
      %309 = vst [vmem:[#allocation3 + $0x14] sm:$0x3] %v305
      %v310 = vld [vmem:[%s219] sm:$0xff]
      %v312 = vcombine.low %v310, %v310
      %v314 = vunpack.c.l.s4 1983009808
      %v315 = vunpack.c.0.s8 %v314
      %v316 = vlaneseq
      %v317 = vshrl.u32 %v316, 7
      %v318 = vsub.s32 %v315, %v317
      %v319 = vrot.slane %v312, %v318
      %v321 = vunpack.c.l.s4 1983009808
      %v322 = vunpack.c.0.s8 %v321
      %v323 = vlaneseq
      %v324 = vshrl.u32 %v323, 7
      %v325 = vsub.s32 %v322, %v324
      %v326 = vrot.slane %v310, %v325
      %327 = vrot.lane.b32.xlu0 %v319, 110
      %v328 = vpop.permute.xlu0 %327
      %329 = vrot.lane.b32.xlu0 %v326, 110
      %v330 = vpop.permute.xlu0 %329
      %v331 = vrot.slane %v328, 4
      %v332 = vrot.slane %v330, 4
      %v333 = vsel %vm270, %v331, %v332
      %vm334 = vcmask 900096
      %v335 = vsel %vm334, %v328, %v333
      %v336 = vsel %vm334, %v330, %v332
      %339 = vst [vmem:[#allocation3 + $0xc] sm:$0xcc] %v335
      %340 = vst [vmem:[#allocation3 + $0x14] sm:$0xc] %v336
      %v341 = vld [vmem:[%s219] sm:$0xff]
      %v343 = vcombine.high %v341, %v341
      %v345 = vunpack.c.l.s4 1983009808
      %v346 = vunpack.c.0.s8 %v345
      %v347 = vlaneseq
      %v348 = vshrl.u32 %v347, 7
      %v349 = vsub.s32 %v346, %v348
      %v350 = vrot.slane %v341, %v349
      %v352 = vunpack.c.l.s4 1983009808
      %v353 = vunpack.c.0.s8 %v352
      %v354 = vlaneseq
      %v355 = vshrl.u32 %v354, 7
      %v356 = vsub.s32 %v353, %v355
      %v357 = vrot.slane %v343, %v356
      %358 = vrot.lane.b32.xlu0 %v350, 109
      %v359 = vpop.permute.xlu0 %358
      %360 = vrot.lane.b32.xlu0 %v357, 109
      %v361 = vpop.permute.xlu0 %360
      %v362 = vrot.slane %v359, 4
      %v363 = vrot.slane %v361, 4
      %v364 = vsel %vm270, %v362, %v363
      %vm365 = vcmask 891904
      %v366 = vsel %vm365, %v359, %v364
      %v367 = vsel %vm365, %v361, %v363
      %370 = vst [vmem:[#allocation3 + $0x18] sm:$0x33] %v366
      %371 = vst [vmem:[#allocation3 + $0x20] sm:$0x3] %v367
      %v372 = vld [vmem:[%s219] sm:$0xff]
      %v374 = vcombine.low %v372, %v372
      %v376 = vunpack.c.l.s4 1983009808
      %v377 = vunpack.c.0.s8 %v376
      %v378 = vlaneseq
      %v379 = vshrl.u32 %v378, 7
      %v380 = vsub.s32 %v377, %v379
      %v381 = vrot.slane %v374, %v380
      %v383 = vunpack.c.l.s4 1983009808
      %v384 = vunpack.c.0.s8 %v383
      %v385 = vlaneseq
      %v386 = vshrl.u32 %v385, 7
      %v387 = vsub.s32 %v384, %v386
      %v388 = vrot.slane %v372, %v387
      %389 = vrot.lane.b32.xlu0 %v381, 108
      %v390 = vpop.permute.xlu0 %389
      %391 = vrot.lane.b32.xlu0 %v388, 108
      %v392 = vpop.permute.xlu0 %391
      %v393 = vrot.slane %v390, 4
      %v394 = vrot.slane %v392, 4
      %v395 = vsel %vm270, %v393, %v394
      %vm396 = vcmask 883712
      %v397 = vsel %vm396, %v390, %v395
      %v398 = vsel %vm396, %v392, %v394
      %401 = vst [vmem:[#allocation3 + $0x18] sm:$0xcc] %v397
      %402 = vst [vmem:[#allocation3 + $0x20] sm:$0xc] %v398
      %v403 = vld [vmem:[%s219] sm:$0xff]
      %v405 = vcombine.high %v403, %v403
      %v407 = vunpack.c.l.s4 1983009808
      %v408 = vunpack.c.0.s8 %v407
      %v409 = vlaneseq
      %v410 = vshrl.u32 %v409, 7
      %v411 = vsub.s32 %v408, %v410
      %v412 = vrot.slane %v403, %v411
      %v414 = vunpack.c.l.s4 1983009808
      %v415 = vunpack.c.0.s8 %v414
      %v416 = vlaneseq
      %v417 = vshrl.u32 %v416, 7
      %v418 = vsub.s32 %v415, %v417
      %v419 = vrot.slane %v405, %v418
      %420 = vrot.lane.b32.xlu0 %v412, 92
      %v421 = vpop.permute.xlu0 %420
      %422 = vrot.lane.b32.xlu0 %v419, 92
      %v423 = vpop.permute.xlu0 %422
      %v424 = vrot.slane %v421, 4
      %v425 = vrot.slane %v423, 4
      %v426 = vsel %vm270, %v424, %v425
      %vm427 = vcmask 752640
      %v428 = vsel %vm427, %v421, %v426
      %v429 = vsel %vm427, %v423, %v425
      %432 = vst [vmem:[#allocation3 + $0x24] sm:$0x33] %v428
      %433 = vst [vmem:[#allocation3 + $0x2c] sm:$0x3] %v429
      %v434 = vld [vmem:[%s219] sm:$0xff]
      %v436 = vcombine.low %v434, %v434
      %v438 = vunpack.c.l.s4 1983009808
      %v439 = vunpack.c.0.s8 %v438
      %v440 = vlaneseq
      %v441 = vshrl.u32 %v440, 7
      %v442 = vsub.s32 %v439, %v441
      %v443 = vrot.slane %v436, %v442
      %v445 = vunpack.c.l.s4 1983009808
      %v446 = vunpack.c.0.s8 %v445
      %v447 = vlaneseq
      %v448 = vshrl.u32 %v447, 7
      %v449 = vsub.s32 %v446, %v448
      %v450 = vrot.slane %v434, %v449
      %451 = vrot.lane.b32.xlu0 %v443, 91
      %v452 = vpop.permute.xlu0 %451
      %453 = vrot.lane.b32.xlu0 %v450, 91
      %v454 = vpop.permute.xlu0 %453
      %v455 = vrot.slane %v452, 4
      %v456 = vrot.slane %v454, 4
      %v457 = vsel %vm270, %v455, %v456
      %vm458 = vcmask 744448
      %v459 = vsel %vm458, %v452, %v457
      %v460 = vsel %vm458, %v454, %v456
      %463 = vst [vmem:[#allocation3 + $0x24] sm:$0xcc] %v459
      %464 = vst [vmem:[#allocation3 + $0x2c] sm:$0xc] %v460
      %v465 = vld [vmem:[%s219] sm:$0xff]
      %v467 = vcombine.high %v465, %v465
      %v469 = vunpack.c.l.s4 1983009808
      %v470 = vunpack.c.0.s8 %v469
      %v471 = vlaneseq
      %v472 = vshrl.u32 %v471, 7
      %v473 = vsub.s32 %v470, %v472
      %v474 = vrot.slane %v465, %v473
      %v476 = vunpack.c.l.s4 1983009808
      %v477 = vunpack.c.0.s8 %v476
      %v478 = vlaneseq
      %v479 = vshrl.u32 %v478, 7
      %v480 = vsub.s32 %v477, %v479
      %v481 = vrot.slane %v467, %v480
      %482 = vrot.lane.b32.xlu0 %v474, 90
      %v483 = vpop.permute.xlu0 %482
      %484 = vrot.lane.b32.xlu0 %v481, 90
      %v485 = vpop.permute.xlu0 %484
      %v486 = vrot.slane %v483, 4
      %v487 = vrot.slane %v485, 4
      %v488 = vsel %vm270, %v486, %v487
      %vm489 = vcmask 736256
      %v490 = vsel %vm489, %v483, %v488
      %v491 = vsel %vm489, %v485, %v487
      %494 = vst [vmem:[#allocation3 + $0x30] sm:$0x33] %v490
      %495 = vst [vmem:[#allocation3 + $0x38] sm:$0x3] %v491
      %v496 = vld [vmem:[%s1] sm:$0xf]
      %v497 = vld [vmem:[#allocation3] sm:$0xff]
      %v498 = vld [vmem:[#allocation3 + $0x8] sm:$0xf]
      %v499 = vld [vmem:[#allocation3 + $0xc] sm:$0xff]
      %v500 = vld [vmem:[#allocation3 + $0x14] sm:$0xf]
      %v501 = vld [vmem:[#allocation3 + $0x18] sm:$0xff]
      %v502 = vld [vmem:[#allocation3 + $0x20] sm:$0xf]
      %v503 = vld [vmem:[#allocation3 + $0x24] sm:$0xff]
      %v504 = vld [vmem:[#allocation3 + $0x2c] sm:$0xf]
      %v505 = vld [vmem:[#allocation3 + $0x30] sm:$0x33]
      %v506 = vld [vmem:[#allocation3 + $0x38] sm:$0x3]
      %v507 = vlaneseq
      %v508 = vand.u32 %v507, 127
      %v509 = vadd.s32 %v508, 128
      %v510 = vadd.s32 %v508, 256
      %vm511 = vcmp.ge.s32.totalorder %v508, 19
      %vm512 = vcmp.ge.s32.totalorder %v509, 19
      %vm513 = vcmp.ge.s32.totalorder %v510, 19
      %vm514 = vcmp.le.s32.totalorder %v508, 34
      %vm515 = vcmp.le.s32.totalorder %v509, 34
      %vm516 = vcmp.le.s32.totalorder %v510, 34
      %vm517 = vmand %vm511, %vm514
      %vm518 = vmand %vm512, %vm515
      %vm519 = vmand %vm513, %vm516
      %vm520 = vcmp.ge.s32.totalorder %v508, 37
      %vm521 = vcmp.ge.s32.totalorder %v509, 37
      %vm522 = vcmp.ge.s32.totalorder %v510, 37
      %vm523 = vcmp.le.s32.totalorder %v508, 52
      %vm524 = vcmp.le.s32.totalorder %v509, 52
      %vm525 = vcmp.le.s32.totalorder %v510, 52
      %vm526 = vmand %vm520, %vm523
      %vm527 = vmand %vm521, %vm524
      %vm528 = vmand %vm522, %vm525
      %vm529 = vmor %vm517, %vm526
      %vm530 = vmor %vm518, %vm527
      %vm531 = vmor %vm519, %vm528
      %vm532 = vcmp.ge.s32.totalorder %v508, 55
      %vm533 = vcmp.ge.s32.totalorder %v509, 55
      %vm534 = vcmp.ge.s32.totalorder %v510, 55
      %vm535 = vcmp.le.s32.totalorder %v508, 70
      %vm536 = vcmp.le.s32.totalorder %v509, 70
      %vm537 = vcmp.le.s32.totalorder %v510, 70
      %vm538 = vmand %vm532, %vm535
      %vm539 = vmand %vm533, %vm536
      %vm540 = vmand %vm534, %vm537
      %vm541 = vmor %vm529, %vm538
      %vm542 = vmor %vm530, %vm539
      %vm543 = vmor %vm531, %vm540
      %vm544 = vcmp.ge.s32.totalorder %v508, 73
      %vm545 = vcmp.ge.s32.totalorder %v509, 73
      %vm546 = vcmp.ge.s32.totalorder %v510, 73
      %vm547 = vcmp.le.s32.totalorder %v508, 88
      %vm548 = vcmp.le.s32.totalorder %v509, 88
      %vm549 = vcmp.le.s32.totalorder %v510, 88
      %vm550 = vmand %vm544, %vm547
      %vm551 = vmand %vm545, %vm548
      %vm552 = vmand %vm546, %vm549
      %vm553 = vmor %vm541, %vm550
      %vm554 = vmor %vm542, %vm551
      %vm555 = vmor %vm543, %vm552
      %vm556 = vcmp.ge.s32.totalorder %v508, 91
      %vm557 = vcmp.ge.s32.totalorder %v509, 91
      %vm558 = vcmp.ge.s32.totalorder %v510, 91
      %vm559 = vcmp.le.s32.totalorder %v508, 106
      %vm560 = vcmp.le.s32.totalorder %v509, 106
      %vm561 = vcmp.le.s32.totalorder %v510, 106
      %vm562 = vmand %vm556, %vm559
      %vm563 = vmand %vm557, %vm560
      %vm564 = vmand %vm558, %vm561
      %vm565 = vmor %vm553, %vm562
      %vm566 = vmor %vm554, %vm563
      %vm567 = vmor %vm555, %vm564
      %vm568 = vcmp.ge.s32.totalorder %v508, 109
      %vm569 = vcmp.ge.s32.totalorder %v509, 109
      %vm570 = vcmp.ge.s32.totalorder %v510, 109
      %vm571 = vcmp.le.s32.totalorder %v508, 124
      %vm572 = vcmp.le.s32.totalorder %v509, 124
      %vm573 = vcmp.le.s32.totalorder %v510, 124
      %vm574 = vmand %vm568, %vm571
      %vm575 = vmand %vm569, %vm572
      %vm576 = vmand %vm570, %vm573
      %vm577 = vmor %vm565, %vm574
      %vm578 = vmor %vm566, %vm575
      %vm579 = vmor %vm567, %vm576
      %vm580 = vcmp.ge.s32.totalorder %v508, 127
      %vm581 = vcmp.ge.s32.totalorder %v509, 127
      %vm582 = vcmp.ge.s32.totalorder %v510, 127
      %vm583 = vcmp.le.s32.totalorder %v508, 142
      %vm584 = vcmp.le.s32.totalorder %v509, 142
      %vm585 = vcmp.le.s32.totalorder %v510, 142
      %vm586 = vmand %vm580, %vm583
      %vm587 = vmand %vm581, %vm584
      %vm588 = vmand %vm582, %vm585
      %vm589 = vmor %vm577, %vm586
      %vm590 = vmor %vm578, %vm587
      %vm591 = vmor %vm579, %vm588
      %vm592 = vcmp.ge.s32.totalorder %v508, 145
      %vm593 = vcmp.ge.s32.totalorder %v509, 145
      %vm594 = vcmp.ge.s32.totalorder %v510, 145
      %vm595 = vcmp.le.s32.totalorder %v508, 160
      %vm596 = vcmp.le.s32.totalorder %v509, 160
      %vm597 = vcmp.le.s32.totalorder %v510, 160
      %vm598 = vmand %vm592, %vm595
      %vm599 = vmand %vm593, %vm596
      %vm600 = vmand %vm594, %vm597
      %vm601 = vmor %vm589, %vm598
      %vm602 = vmor %vm590, %vm599
      %vm603 = vmor %vm591, %vm600
      %vm604 = vcmp.ge.s32.totalorder %v508, 163
      %vm605 = vcmp.ge.s32.totalorder %v509, 163
      %vm606 = vcmp.ge.s32.totalorder %v510, 163
      %vm607 = vcmp.le.s32.totalorder %v508, 178
      %vm608 = vcmp.le.s32.totalorder %v509, 178
      %vm609 = vcmp.le.s32.totalorder %v510, 178
      %vm610 = vmand %vm604, %vm607
      %vm611 = vmand %vm605, %vm608
      %vm612 = vmand %vm606, %vm609
      %vm613 = vmor %vm601, %vm610
      %vm614 = vmor %vm602, %vm611
      %vm615 = vmor %vm603, %vm612
      %vm616 = vcmp.ge.s32.totalorder %v508, 181
      %vm617 = vcmp.ge.s32.totalorder %v509, 181
      %vm618 = vcmp.ge.s32.totalorder %v510, 181
      %vm619 = vcmp.le.s32.totalorder %v508, 196
      %vm620 = vcmp.le.s32.totalorder %v509, 196
      %vm621 = vcmp.le.s32.totalorder %v510, 196
      %vm622 = vmand %vm616, %vm619
      %vm623 = vmand %vm617, %vm620
      %vm624 = vmand %vm618, %vm621
      %vm625 = vmor %vm613, %vm622
      %vm626 = vmor %vm614, %vm623
      %vm627 = vmor %vm615, %vm624
      %vm628 = vcmp.ge.s32.totalorder %v508, 199
      %vm629 = vcmp.ge.s32.totalorder %v509, 199
      %vm630 = vcmp.ge.s32.totalorder %v510, 199
      %vm631 = vcmp.le.s32.totalorder %v508, 214
      %vm632 = vcmp.le.s32.totalorder %v509, 214
      %vm633 = vcmp.le.s32.totalorder %v510, 214
      %vm634 = vmand %vm628, %vm631
      %vm635 = vmand %vm629, %vm632
      %vm636 = vmand %vm630, %vm633
      %vm637 = vmor %vm625, %vm634
      %vm638 = vmor %vm626, %vm635
      %vm639 = vmor %vm627, %vm636
      %vm640 = vcmp.ge.s32.totalorder %v508, 217
      %vm641 = vcmp.ge.s32.totalorder %v509, 217
      %vm642 = vcmp.ge.s32.totalorder %v510, 217
      %vm643 = vcmp.le.s32.totalorder %v508, 232
      %vm644 = vcmp.le.s32.totalorder %v509, 232
      %vm645 = vcmp.le.s32.totalorder %v510, 232
      %vm646 = vmand %vm640, %vm643
      %vm647 = vmand %vm641, %vm644
      %vm648 = vmand %vm642, %vm645
      %vm649 = vmor %vm637, %vm646
      %vm650 = vmor %vm638, %vm647
      %vm651 = vmor %vm639, %vm648
      %vm652 = vcmp.ge.s32.totalorder %v508, 235
      %vm653 = vcmp.ge.s32.totalorder %v509, 235
      %vm654 = vcmp.ge.s32.totalorder %v510, 235
      %vm655 = vcmp.le.s32.totalorder %v508, 250
      %vm656 = vcmp.le.s32.totalorder %v509, 250
      %vm657 = vcmp.le.s32.totalorder %v510, 250
      %vm658 = vmand %vm652, %vm655
      %vm659 = vmand %vm653, %vm656
      %vm660 = vmand %vm654, %vm657
      %vm661 = vmor %vm649, %vm658
      %vm662 = vmor %vm650, %vm659
      %vm663 = vmor %vm651, %vm660
      %vm664 = vcmp.ge.s32.totalorder %v508, 253
      %vm665 = vcmp.ge.s32.totalorder %v509, 253
      %vm666 = vcmp.ge.s32.totalorder %v510, 253
      %vm667 = vcmp.le.s32.totalorder %v508, 268
      %vm668 = vcmp.le.s32.totalorder %v509, 268
      %vm669 = vcmp.le.s32.totalorder %v510, 268
      %vm670 = vmand %vm664, %vm667
      %vm671 = vmand %vm665, %vm668
      %vm672 = vmand %vm666, %vm669
      %vm673 = vmor %vm661, %vm670
      %vm674 = vmor %vm662, %vm671
      %vm675 = vmor %vm663, %vm672
      %vm676 = vcmp.ge.s32.totalorder %v508, 271
      %vm677 = vcmp.ge.s32.totalorder %v509, 271
      %vm678 = vcmp.ge.s32.totalorder %v510, 271
      %vm679 = vcmp.le.s32.totalorder %v508, 286
      %vm680 = vcmp.le.s32.totalorder %v509, 286
      %vm681 = vcmp.le.s32.totalorder %v510, 286
      %vm682 = vmand %vm676, %vm679
      %vm683 = vmand %vm677, %vm680
      %vm684 = vmand %vm678, %vm681
      %vm685 = vmor %vm673, %vm682
      %vm686 = vmor %vm674, %vm683
      %vm687 = vmor %vm675, %vm684
      %vm688 = vcmp.ge.s32.totalorder %v508, 289
      %vm689 = vcmp.ge.s32.totalorder %v509, 289
      %vm690 = vcmp.ge.s32.totalorder %v510, 289
      %vm691 = vcmp.le.s32.totalorder %v508, 304
      %vm692 = vcmp.le.s32.totalorder %v509, 304
      %vm693 = vcmp.le.s32.totalorder %v510, 304
      %vm694 = vmand %vm688, %vm691
      %vm695 = vmand %vm689, %vm692
      %vm696 = vmand %vm690, %vm693
      %vm697 = vmor %vm685, %vm694
      %vm698 = vmor %vm686, %vm695
      %vm699 = vmor %vm687, %vm696
      %v700 = vsel %vm697, 1, 0
      %v701 = vsel %vm698, 1, 0
      %v702 = vsel %vm699, 1, 0
      %v703 = vcvt.s32.f32 %v700
      %v704 = vcvt.s32.f32 %v701
      %v705 = vcvt.s32.f32 %v702
      %v706 = vld [vmem:[%s2] sm:$0xff]
      %708 = vset.pattern.permute.xlu0 0
      %709 = vperm.xlu0 %708, %v706
      %v710 = vpop.permute.xlu0 %709
      %v722 = vunpack.c.l.b16 %v497
      %v723 = vunpack.c.h.b16 %v497
      %v724 = vunpack.c.l.b16 %v498
      %v725 = vunpack.c.l.b16 %v499
      %v726 = vunpack.c.h.b16 %v499
      %v727 = vunpack.c.l.b16 %v500
      %v728 = vunpack.c.l.b16 %v501
      %v729 = vunpack.c.h.b16 %v501
      %v730 = vunpack.c.l.b16 %v502
      %v731 = vunpack.c.l.b16 %v503
      %v732 = vunpack.c.h.b16 %v503
      %v733 = vunpack.c.l.b16 %v504
      %v734 = vunpack.c.l.b16 %v505
      %v735 = vunpack.c.h.b16 %v505
      %v736 = vunpack.c.l.b16 %v506
      %v737 = vpack.c.b16 %v725, %v722
      %v738 = vpack.c.b16 %v726, %v723
      %v739 = vpack.c.b16 %v727, %v724
      %v740 = vpack.c.b16 %v731, %v728
      %v741 = vpack.c.b16 %v732, %v729
      %v742 = vpack.c.b16 %v733, %v730
      %v743 = vpack.c.b16 %v734, %v734
      %v744 = vpack.c.b16 %v735, %v735
      %v745 = vpack.c.b16 %v736, %v736
      %vm752 = vcmask 293888
      %v754 = vsel %vm752, %v496, 0
      %vm756 = vcmask 1041408
      %v758 = vsel %vm756, %v743, 0
      %v761 = vsel %vm756, %v744, 0
      %v764 = vsel %vm756, %v745, 0
      %766 = vmatprep.subr.bf16.mxu0 %v738
      %767 = vmatpush1.bf16.msra.mxu0 %v737
      %768 = vmatprep.subr.bf16.mxu0 %v741
      %769 = vmatpush1.bf16.msra.mxu0 %v740
      %770 = vmatprep.subr.bf16.mxu0 %v761
      %771 = vmatpush1.bf16.msra.mxu0 %v758
      %772 = vmatprep.subr.bf16.mxu0 0
      %773 = vmatpush1.bf16.msra.mxu0 0
      %774 = vmatprep.subr.bf16.mxu0 0
      %775 = vmatpush1.bf16.msra.mxu0 0
      %776 = vmatprep.subr.bf16.mxu0 0
      %777 = vmatpush1.bf16.msra.mxu0 0
      %778 = vmatprep.subr.bf16.mxu0 0
      %779 = vmatpush1.bf16.msra.mxu0 0
      %780 = vmatprep.subr.bf16.mxu0 0
      %781 = vmatpush1.bf16.msra.mxu0 0
      %782 = vmatprep.subr.bf16.mxu0 0
      %783 = vmatpush1.bf16.msra.mxu0 0
      %784 = vmatprep.subr.bf16.mxu0 0
      %785 = vmatpush1.bf16.msra.mxu0 0
      %786 = vmatprep.subr.bf16.mxu0 0
      %787 = vmatpush1.bf16.msra.mxu0 0
      %788 = vmatprep.subr.bf16.mxu0 0
      %789 = vmatpush1.bf16.msra.mxu0 0
      %790 = vmatprep.subr.bf16.mxu0 0
      %791 = vmatpush1.bf16.msra.mxu0 0
      %792 = vmatprep.subr.bf16.mxu0 0
      %793 = vmatpush1.bf16.msra.mxu0 0
      %794 = vmatprep.subr.bf16.mxu0 0
      %795 = vmatpush1.bf16.msra.mxu0 0
      %796 = vmatprep.subr.bf16.mxu0 0
      %797 = vmatpush1.bf16.msra.mxu0 0
      %798 = vmatprep.mubr.bf16.mxu0 0
      %799 = vmatmul.mubr.bf16.gmra.mrb[0].mxu0 %v754
      %v800 = vpop.f32.mrb[0].mxu0
      %v801 = vadd.f32 %v710, %v800
      %v802 = vpop.f32.mrb[0].mxu0
      %v803 = vadd.f32 %v710, %v802
      %v804 = vpop.f32.mrb[0].mxu0
      %v805 = vpop.f32.mrb[0].mxu0
      %806 = vdwg.mxu0
      %807 = vmatprep.subr.bf16.mxu0 0
      %808 = vmatpush1.bf16.msra.mxu0 %v739
      %809 = vmatprep.subr.bf16.mxu0 0
      %810 = vmatpush1.bf16.msra.mxu0 %v742
      %811 = vmatprep.subr.bf16.mxu0 0
      %812 = vmatpush1.bf16.msra.mxu0 %v764
      %813 = vmatprep.subr.bf16.mxu0 0
      %814 = vmatpush1.bf16.msra.mxu0 0
      %815 = vmatprep.subr.bf16.mxu0 0
      %816 = vmatpush1.bf16.msra.mxu0 0
      %817 = vmatprep.subr.bf16.mxu0 0
      %818 = vmatpush1.bf16.msra.mxu0 0
      %819 = vmatprep.subr.bf16.mxu0 0
      %820 = vmatpush1.bf16.msra.mxu0 0
      %821 = vmatprep.subr.bf16.mxu0 0
      %822 = vmatpush1.bf16.msra.mxu0 0
      %823 = vmatprep.subr.bf16.mxu0 0
      %824 = vmatpush1.bf16.msra.mxu0 0
      %825 = vmatprep.subr.bf16.mxu0 0
      %826 = vmatpush1.bf16.msra.mxu0 0
      %827 = vmatprep.subr.bf16.mxu0 0
      %828 = vmatpush1.bf16.msra.mxu0 0
      %829 = vmatprep.subr.bf16.mxu0 0
      %830 = vmatpush1.bf16.msra.mxu0 0
      %831 = vmatprep.subr.bf16.mxu0 0
      %832 = vmatpush1.bf16.msra.mxu0 0
      %833 = vmatprep.subr.bf16.mxu0 0
      %834 = vmatpush1.bf16.msra.mxu0 0
      %835 = vmatprep.subr.bf16.mxu0 0
      %836 = vmatpush1.bf16.msra.mxu0 0
      %837 = vmatprep.subr.bf16.mxu0 0
      %838 = vmatpush1.bf16.msra.mxu0 0
      %839 = vmatprep.mubr.bf16.mxu0 0
      %840 = vmatmul.mubr.bf16.gmra.mrb[0].mxu0 %v754
      %v841 = vpop.f32.mrb[0].mxu0
      %v842 = vadd.f32 %v710, %v841
      %v843 = vpop.f32.mrb[0].mxu0
      %v844 = vpop.f32.mrb[0].mxu0
      %v845 = vpop.f32.mrb[0].mxu0
      %846 = vdwg.mxu0
      %v847 = vmax.f32 %v801, 0.0
      %v848 = vmax.f32 %v803, 0.0
      %v849 = vmax.f32 %v842, 0.0
      %v850 = vmul.f32 %v847, %v703
      %v851 = vmul.f32 %v848, %v704
      %v852 = vmul.f32 %v849, %v705
      %v853 = vpack.c.bf16 %v850, %v850
      %v854 = vpack.c.bf16 %v851, %v851
      %v855 = vpack.c.bf16 %v852, %v852
      %v859 = vunpack.c.l.b16 %v853
      %v860 = vunpack.c.l.b16 %v854
      %v861 = vunpack.c.l.b16 %v855
      %v862 = vpack.c.b16 %v860, %v859
      %v863 = vpack.c.b16 %v861, %v861
      %866 = vst [vmem:[#allocation2] sm:$0xff] %v862
      %867 = vst [vmem:[#allocation2 + $0x8] sm:$0xf] %v863
      %868 = vst [vmem:[#allocation2 + $0xc] sm:$0xf] 0
      %v869 = vld [vmem:[#allocation2] sm:$0xff]
      %v870 = vld [vmem:[#allocation2 + $0x8] sm:$0xf]
      %871 = vst [vmem:[#allocation4] sm:$0xff] %v869
      %872 = vst [vmem:[#allocation4 + $0x8] sm:$0xf] %v870
      %v873 = vld [vmem:[#allocation2] sm:$0xff]
      %v874 = vld [vmem:[#allocation2 + $0x8] sm:$0xff]
      %877 = vrot.lane.b32.xlu0 %v873, 127
      %v878 = vpop.permute.xlu0 %877
      %879 = vrot.lane.b32.xlu0 %v874, 127
      %v880 = vpop.permute.xlu0 %879
      %v881 = vrot.slane %v878, 4
      %v882 = vrot.slane %v880, 4
      %v883 = vsel %vm270, %v881, %v882
      %v884 = vsel %vm272, %v878, %v883
      %v885 = vsel %vm272, %v880, %v882
      %888 = vst [vmem:[#allocation4 + $0xc] sm:$0xff] %v884
      %889 = vst [vmem:[#allocation4 + $0x14] sm:$0xf] %v885
      %v890 = vld [vmem:[#allocation2] sm:$0xff]
      %v891 = vld [vmem:[#allocation2 + $0x8] sm:$0xff]
      %894 = vrot.lane.b32.xlu0 %v890, 126
      %v895 = vpop.permute.xlu0 %894
      %896 = vrot.lane.b32.xlu0 %v891, 126
      %v897 = vpop.permute.xlu0 %896
      %v898 = vrot.slane %v895, 4
      %v899 = vrot.slane %v897, 4
      %v900 = vsel %vm270, %v898, %v899
      %v901 = vsel %vm303, %v895, %v900
      %v902 = vsel %vm303, %v897, %v899
      %905 = vst [vmem:[#allocation4 + $0x18] sm:$0xff] %v901
      %906 = vst [vmem:[#allocation4 + $0x20] sm:$0xf] %v902
      %v907 = vld [vmem:[#allocation2] sm:$0xff]
      %v908 = vld [vmem:[#allocation2 + $0x8] sm:$0xff]
      %911 = vrot.lane.b32.xlu0 %v907, 110
      %v912 = vpop.permute.xlu0 %911
      %913 = vrot.lane.b32.xlu0 %v908, 110
      %v914 = vpop.permute.xlu0 %913
      %v915 = vrot.slane %v912, 4
      %v916 = vrot.slane %v914, 4
      %v917 = vsel %vm270, %v915, %v916
      %v918 = vsel %vm334, %v912, %v917
      %v919 = vsel %vm334, %v914, %v916
      %922 = vst [vmem:[#allocation4 + $0x24] sm:$0xff] %v918
      %923 = vst [vmem:[#allocation4 + $0x2c] sm:$0xf] %v919
      %v924 = vld [vmem:[#allocation2] sm:$0xff]
      %v925 = vld [vmem:[#allocation2 + $0x8] sm:$0xff]
      %928 = vrot.lane.b32.xlu0 %v924, 109
      %v929 = vpop.permute.xlu0 %928
      %930 = vrot.lane.b32.xlu0 %v925, 109
      %v931 = vpop.permute.xlu0 %930
      %v932 = vrot.slane %v929, 4
      %v933 = vrot.slane %v931, 4
      %v934 = vsel %vm270, %v932, %v933
      %v935 = vsel %vm365, %v929, %v934
      %v936 = vsel %vm365, %v931, %v933
      %939 = vst [vmem:[#allocation4 + $0x30] sm:$0xff] %v935
      %940 = vst [vmem:[#allocation4 + $0x38] sm:$0xf] %v936
      %v941 = vld [vmem:[#allocation2] sm:$0xff]
      %v942 = vld [vmem:[#allocation2 + $0x8] sm:$0xff]
      %945 = vrot.lane.b32.xlu0 %v941, 108
      %v946 = vpop.permute.xlu0 %945
      %947 = vrot.lane.b32.xlu0 %v942, 108
      %v948 = vpop.permute.xlu0 %947
      %v949 = vrot.slane %v946, 4
      %v950 = vrot.slane %v948, 4
      %v951 = vsel %vm270, %v949, %v950
      %v952 = vsel %vm396, %v946, %v951
      %v953 = vsel %vm396, %v948, %v950
      %956 = vst [vmem:[#allocation4 + $0x3c] sm:$0xff] %v952
      %957 = vst [vmem:[#allocation4 + $0x44] sm:$0xf] %v953
      %v958 = vld [vmem:[#allocation2] sm:$0xff]
      %v959 = vld [vmem:[#allocation2 + $0x8] sm:$0xff]
      %962 = vrot.lane.b32.xlu0 %v958, 92
      %v963 = vpop.permute.xlu0 %962
      %964 = vrot.lane.b32.xlu0 %v959, 92
      %v965 = vpop.permute.xlu0 %964
      %v966 = vrot.slane %v963, 4
      %v967 = vrot.slane %v965, 4
      %v968 = vsel %vm270, %v966, %v967
      %v969 = vsel %vm427, %v963, %v968
      %v970 = vsel %vm427, %v965, %v967
      %973 = vst [vmem:[#allocation4 + $0x48] sm:$0xff] %v969
      %974 = vst [vmem:[#allocation4 + $0x50] sm:$0xf] %v970
      %v975 = vld [vmem:[#allocation2] sm:$0xff]
      %v976 = vld [vmem:[#allocation2 + $0x8] sm:$0xff]
      %979 = vrot.lane.b32.xlu0 %v975, 91
      %v980 = vpop.permute.xlu0 %979
      %981 = vrot.lane.b32.xlu0 %v976, 91
      %v982 = vpop.permute.xlu0 %981
      %v983 = vrot.slane %v980, 4
      %v984 = vrot.slane %v982, 4
      %v985 = vsel %vm270, %v983, %v984
      %v986 = vsel %vm458, %v980, %v985
      %v987 = vsel %vm458, %v982, %v984
      %990 = vst [vmem:[#allocation4 + $0x54] sm:$0xff] %v986
      %991 = vst [vmem:[#allocation4 + $0x5c] sm:$0xf] %v987
      %v992 = vld [vmem:[#allocation2] sm:$0xff]
      %v993 = vld [vmem:[#allocation2 + $0x8] sm:$0xff]
      %996 = vrot.lane.b32.xlu0 %v992, 90
      %v997 = vpop.permute.xlu0 %996
      %998 = vrot.lane.b32.xlu0 %v993, 90
      %v999 = vpop.permute.xlu0 %998
      %v1000 = vrot.slane %v997, 4
      %v1001 = vrot.slane %v999, 4
      %v1002 = vsel %vm270, %v1000, %v1001
      %v1003 = vsel %vm489, %v997, %v1002
      %v1004 = vsel %vm489, %v999, %v1001
      %1007 = vst [vmem:[#allocation4 + $0x60] sm:$0xff] %v1003
      %1008 = vst [vmem:[#allocation4 + $0x68] sm:$0xf] %v1004
      %v1009 = vld [vmem:[%s3] sm:$0xf]
      %v1010 = vld [vmem:[%s3 + $0x4] sm:$0xf]
      %v1011 = vld [vmem:[%s3 + $0x8] sm:$0xf]
      %v1012 = vld [vmem:[%s3 + $0xc] sm:$0xf]
      %v1013 = vld [vmem:[#allocation4] sm:$0xff]
      %v1014 = vld [vmem:[#allocation4 + $0x8] sm:$0xf]
      %v1015 = vld [vmem:[#allocation4 + $0xc] sm:$0xff]
      %v1016 = vld [vmem:[#allocation4 + $0x14] sm:$0xf]
      %v1017 = vld [vmem:[#allocation4 + $0x18] sm:$0xff]
      %v1018 = vld [vmem:[#allocation4 + $0x20] sm:$0xf]
      %v1019 = vld [vmem:[#allocation4 + $0x24] sm:$0xff]
      %v1020 = vld [vmem:[#allocation4 + $0x2c] sm:$0xf]
      %v1021 = vld [vmem:[#allocation4 + $0x30] sm:$0xff]
      %v1022 = vld [vmem:[#allocation4 + $0x38] sm:$0xf]
      %v1023 = vld [vmem:[#allocation4 + $0x3c] sm:$0xff]
      %v1024 = vld [vmem:[#allocation4 + $0x44] sm:$0xf]
      %v1025 = vld [vmem:[#allocation4 + $0x48] sm:$0xff]
      %v1026 = vld [vmem:[#allocation4 + $0x50] sm:$0xf]
      %v1027 = vld [vmem:[#allocation4 + $0x54] sm:$0xff]
      %v1028 = vld [vmem:[#allocation4 + $0x5c] sm:$0xf]
      %v1029 = vld [vmem:[#allocation4 + $0x60] sm:$0xff]
      %v1030 = vld [vmem:[#allocation4 + $0x68] sm:$0xf]
      %v1031 = vld [vmem:[%s4] sm:$0xff]
      %v1032 = vld [vmem:[%s4 + $0x8] sm:$0xff]
      %v1033 = vld [vmem:[%s4 + $0x10] sm:$0xff]
      %v1034 = vld [vmem:[%s4 + $0x18] sm:$0xff]
      %1036 = vset.pattern.permute.xlu0 0
      %1037 = vperm.xlu0 %1036, %v1031
      %v1038 = vpop.permute.xlu0 %1037
      %1041 = vset.pattern.permute.xlu0 0
      %1042 = vperm.xlu0 %1041, %v1032
      %v1043 = vpop.permute.xlu0 %1042
      %1046 = vset.pattern.permute.xlu0 0
      %1047 = vperm.xlu0 %1046, %v1033
      %v1048 = vpop.permute.xlu0 %1047
      %1051 = vset.pattern.permute.xlu0 0
      %1052 = vperm.xlu0 %1051, %v1034
      %v1053 = vpop.permute.xlu0 %1052
      %v1059 = vunpack.c.l.b16 %v1009
      %v1060 = vunpack.c.l.b16 %v1010
      %v1061 = vunpack.c.l.b16 %v1011
      %v1062 = vunpack.c.l.b16 %v1012
      %v1063 = vpack.c.b16 %v1060, %v1059
      %v1064 = vpack.c.b16 %v1062, %v1061
      %v1083 = vunpack.c.l.b16 %v1013
      %v1084 = vunpack.c.h.b16 %v1013
      %v1085 = vunpack.c.l.b16 %v1014
      %v1086 = vunpack.c.l.b16 %v1015
      %v1087 = vunpack.c.h.b16 %v1015
      %v1088 = vunpack.c.l.b16 %v1016
      %v1089 = vunpack.c.l.b16 %v1017
      %v1090 = vunpack.c.h.b16 %v1017
      %v1091 = vunpack.c.l.b16 %v1018
      %v1092 = vunpack.c.l.b16 %v1019
      %v1093 = vunpack.c.h.b16 %v1019
      %v1094 = vunpack.c.l.b16 %v1020
      %v1095 = vunpack.c.l.b16 %v1021
      %v1096 = vunpack.c.h.b16 %v1021
      %v1097 = vunpack.c.l.b16 %v1022
      %v1098 = vunpack.c.l.b16 %v1023
      %v1099 = vunpack.c.h.b16 %v1023
      %v1100 = vunpack.c.l.b16 %v1024
      %v1101 = vunpack.c.l.b16 %v1025
      %v1102 = vunpack.c.h.b16 %v1025
      %v1103 = vunpack.c.l.b16 %v1026
      %v1104 = vunpack.c.l.b16 %v1027
      %v1105 = vunpack.c.h.b16 %v1027
      %v1106 = vunpack.c.l.b16 %v1028
      %v1107 = vunpack.c.l.b16 %v1029
      %v1108 = vunpack.c.h.b16 %v1029
      %v1109 = vunpack.c.l.b16 %v1030
      %v1110 = vpack.c.b16 %v1086, %v1083
      %v1111 = vpack.c.b16 %v1087, %v1084
      %v1112 = vpack.c.b16 %v1088, %v1085
      %v1113 = vpack.c.b16 %v1092, %v1089
      %v1114 = vpack.c.b16 %v1093, %v1090
      %v1115 = vpack.c.b16 %v1094, %v1091
      %v1116 = vpack.c.b16 %v1098, %v1095
      %v1117 = vpack.c.b16 %v1099, %v1096
      %v1118 = vpack.c.b16 %v1100, %v1097
      %v1119 = vpack.c.b16 %v1104, %v1101
      %v1120 = vpack.c.b16 %v1105, %v1102
      %v1121 = vpack.c.b16 %v1106, %v1103
      %v1122 = vpack.c.b16 %v1107, %v1107
      %v1123 = vpack.c.b16 %v1108, %v1108
      %v1124 = vpack.c.b16 %v1109, %v1109
      %vm1137 = vcmask 588800
      %v1139 = vsel %vm1137, %v1063, 0
      %v1142 = vsel %vm1137, %v1064, 0
      %vm1144 = vcmask 1043456
      %v1146 = vsel %vm1144, %v1122, 0
      %v1149 = vsel %vm1144, %v1123, 0
      %v1152 = vsel %vm1144, %v1124, 0
      %1154 = vmatprep.subr.bf16.mxu0 %v1111
      %1155 = vmatpush1.bf16.msra.mxu0 %v1110
      %1156 = vmatprep.subr.bf16.mxu0 %v1114
      %1157 = vmatpush1.bf16.msra.mxu0 %v1113
      %1158 = vmatprep.subr.bf16.mxu0 %v1117
      %1159 = vmatpush1.bf16.msra.mxu0 %v1116
      %1160 = vmatprep.subr.bf16.mxu0 %v1120
      %1161 = vmatpush1.bf16.msra.mxu0 %v1119
      %1162 = vmatprep.subr.bf16.mxu0 %v1149
      %1163 = vmatpush1.bf16.msra.mxu0 %v1146
      %1164 = vmatprep.subr.bf16.mxu0 0
      %1165 = vmatpush1.bf16.msra.mxu0 0
      %1166 = vmatprep.subr.bf16.mxu0 0
      %1167 = vmatpush1.bf16.msra.mxu0 0
      %1168 = vmatprep.subr.bf16.mxu0 0
      %1169 = vmatpush1.bf16.msra.mxu0 0
      %1170 = vmatprep.subr.bf16.mxu0 0
      %1171 = vmatpush1.bf16.msra.mxu0 0
      %1172 = vmatprep.subr.bf16.mxu0 0
      %1173 = vmatpush1.bf16.msra.mxu0 0
      %1174 = vmatprep.subr.bf16.mxu0 0
      %1175 = vmatpush1.bf16.msra.mxu0 0
      %1176 = vmatprep.subr.bf16.mxu0 0
      %1177 = vmatpush1.bf16.msra.mxu0 0
      %1178 = vmatprep.subr.bf16.mxu0 0
      %1179 = vmatpush1.bf16.msra.mxu0 0
      %1180 = vmatprep.subr.bf16.mxu0 0
      %1181 = vmatpush1.bf16.msra.mxu0 0
      %1182 = vmatprep.subr.bf16.mxu0 0
      %1183 = vmatpush1.bf16.msra.mxu0 0
      %1184 = vmatprep.subr.bf16.mxu0 0
      %1185 = vmatpush1.bf16.msra.mxu0 0
      %1186 = vmatprep.mubr.bf16.mxu0 0
      %1187 = vmatmul.mubr.bf16.gmra.mrb[0].mxu0 %v1139
      %v1188 = vpop.f32.mrb[0].mxu0
      %v1189 = vadd.f32 %v1038, %v1188
      %v1190 = vpop.f32.mrb[0].mxu0
      %v1191 = vadd.f32 %v1038, %v1190
      %v1192 = vpop.f32.mrb[0].mxu0
      %v1193 = vadd.f32 %v1043, %v1192
      %v1194 = vpop.f32.mrb[0].mxu0
      %v1195 = vadd.f32 %v1043, %v1194
      %1196 = vmatprep.mubr.bf16.mxu0 0
      %1197 = vmatmul.mubr.bf16.gmra.mrb[0].mxu0 %v1142
      %v1198 = vpop.f32.mrb[0].mxu0
      %v1199 = vadd.f32 %v1048, %v1198
      %v1200 = vpop.f32.mrb[0].mxu0
      %v1201 = vadd.f32 %v1048, %v1200
      %v1202 = vpop.f32.mrb[0].mxu0
      %v1203 = vadd.f32 %v1053, %v1202
      %v1204 = vpop.f32.mrb[0].mxu0
      %v1205 = vadd.f32 %v1053, %v1204
      %1206 = vdwg.mxu0
      %1207 = vmatprep.subr.bf16.mxu0 0
      %1208 = vmatpush1.bf16.msra.mxu0 %v1112
      %1209 = vmatprep.subr.bf16.mxu0 0
      %1210 = vmatpush1.bf16.msra.mxu0 %v1115
      %1211 = vmatprep.subr.bf16.mxu0 0
      %1212 = vmatpush1.bf16.msra.mxu0 %v1118
      %1213 = vmatprep.subr.bf16.mxu0 0
      %1214 = vmatpush1.bf16.msra.mxu0 %v1121
      %1215 = vmatprep.subr.bf16.mxu0 0
      %1216 = vmatpush1.bf16.msra.mxu0 %v1152
      %1217 = vmatprep.subr.bf16.mxu0 0
      %1218 = vmatpush1.bf16.msra.mxu0 0
      %1219 = vmatprep.subr.bf16.mxu0 0
      %1220 = vmatpush1.bf16.msra.mxu0 0
      %1221 = vmatprep.subr.bf16.mxu0 0
      %1222 = vmatpush1.bf16.msra.mxu0 0
      %1223 = vmatprep.subr.bf16.mxu0 0
      %1224 = vmatpush1.bf16.msra.mxu0 0
      %1225 = vmatprep.subr.bf16.mxu0 0
      %1226 = vmatpush1.bf16.msra.mxu0 0
      %1227 = vmatprep.subr.bf16.mxu0 0
      %1228 = vmatpush1.bf16.msra.mxu0 0
      %1229 = vmatprep.subr.bf16.mxu0 0
      %1230 = vmatpush1.bf16.msra.mxu0 0
      %1231 = vmatprep.subr.bf16.mxu0 0
      %1232 = vmatpush1.bf16.msra.mxu0 0
      %1233 = vmatprep.subr.bf16.mxu0 0
      %1234 = vmatpush1.bf16.msra.mxu0 0
      %1235 = vmatprep.subr.bf16.mxu0 0
      %1236 = vmatpush1.bf16.msra.mxu0 0
      %1237 = vmatprep.subr.bf16.mxu0 0
      %1238 = vmatpush1.bf16.msra.mxu0 0
      %1239 = vmatprep.mubr.bf16.mxu0 0
      %1240 = vmatmul.mubr.bf16.gmra.mrb[0].mxu0 %v1139
      %v1241 = vpop.f32.mrb[0].mxu0
      %v1242 = vadd.f32 %v1038, %v1241
      %v1243 = vpop.f32.mrb[0].mxu0
      %v1244 = vpop.f32.mrb[0].mxu0
      %v1245 = vadd.f32 %v1043, %v1244
      %v1246 = vpop.f32.mrb[0].mxu0
      %1247 = vmatprep.mubr.bf16.mxu0 0
      %1248 = vmatmul.mubr.bf16.gmra.mrb[0].mxu0 %v1142
      %v1249 = vpop.f32.mrb[0].mxu0
      %v1250 = vadd.f32 %v1048, %v1249
      %v1251 = vpop.f32.mrb[0].mxu0
      %v1252 = vpop.f32.mrb[0].mxu0
      %v1253 = vadd.f32 %v1053, %v1252
      %v1254 = vpop.f32.mrb[0].mxu0
      %1255 = vdwg.mxu0
      %v1256 = vmax.f32 %v1189, 0.0
      %v1257 = vmax.f32 %v1191, 0.0
      %v1258 = vmax.f32 %v1242, 0.0
      %v1259 = vmax.f32 %v1193, 0.0
      %v1260 = vmax.f32 %v1195, 0.0
      %v1261 = vmax.f32 %v1245, 0.0
      %v1262 = vmax.f32 %v1199, 0.0
      %v1263 = vmax.f32 %v1201, 0.0
      %v1264 = vmax.f32 %v1250, 0.0
      %v1265 = vmax.f32 %v1203, 0.0
      %v1266 = vmax.f32 %v1205, 0.0
      %v1267 = vmax.f32 %v1253, 0.0
      %v1268 = vpack.c.bf16 %v1259, %v1256
      %v1269 = vpack.c.bf16 %v1260, %v1257
      %v1270 = vpack.c.bf16 %v1261, %v1258
      %v1271 = vpack.c.bf16 %v1265, %v1262
      %v1272 = vpack.c.bf16 %v1266, %v1263
      %v1273 = vpack.c.bf16 %v1267, %v1264
      %v1280 = vunpack.c.l.b16 %v1268
      %v1281 = vunpack.c.l.b16 %v1269
      %v1282 = vunpack.c.l.b16 %v1270
      %v1283 = vunpack.c.h.b16 %v1268
      %v1284 = vunpack.c.h.b16 %v1269
      %v1285 = vunpack.c.h.b16 %v1270
      %v1286 = vunpack.c.l.b16 %v1271
      %v1287 = vunpack.c.l.b16 %v1272
      %v1288 = vunpack.c.l.b16 %v1273
      %v1289 = vunpack.c.h.b16 %v1271
      %v1290 = vunpack.c.h.b16 %v1272
      %v1291 = vunpack.c.h.b16 %v1273
      %v1292 = vpack.c.b16 %v1281, %v1280
      %v1293 = vpack.c.b16 %v1282, %v1282
      %v1294 = vpack.c.b16 %v1284, %v1283
      %v1295 = vpack.c.b16 %v1285, %v1285
      %v1296 = vpack.c.b16 %v1287, %v1286
      %v1297 = vpack.c.b16 %v1288, %v1288
      %v1298 = vpack.c.b16 %v1290, %v1289
      %v1299 = vpack.c.b16 %v1291, %v1291
      %1308 = vst [vmem:[%s224] sm:$0xff] %v1292
      %1309 = vst [vmem:[%s224 + $0x8] sm:$0xf] %v1293
      %1310 = vst [vmem:[%s224 + $0xc] sm:$0xff] %v1294
      %1311 = vst [vmem:[%s224 + $0x14] sm:$0xf] %v1295
      %1312 = vst [vmem:[%s224 + $0x18] sm:$0xff] %v1296
      %1313 = vst [vmem:[%s224 + $0x20] sm:$0xf] %v1297
      %1314 = vst [vmem:[%s224 + $0x24] sm:$0xff] %v1298
      %1315 = vst [vmem:[%s224 + $0x2c] sm:$0xf] %v1299
      %p1316 = scmp.lt.s32.totalorder %s16, 1
      %s1317 = scalar_select %p1316, %s16, 1
      %s1318 = smul.addr %s1317, 12
      %s1319 = smul.addr %s1318, 4
      %s1320 = scalar_lea.vmem %s5, %s1319
      // Predicated region
      $region41: #{basic_block_forward.1} parent=39 // pred_check
        %p1321 = pneg %p144
      $region42: #{basic_block_forward.1} parent=39 // pred_check_branch
        %1323 = sbr.rel (%p1321) target = $region44
      $region43: #{basic_block_forward.1} parent=39 // pred_region
        _
      $region44: #{basic_block_forward.1} parent=39 // pred_fallthru
        _
    $region40: #{basic_block_forward.1} parent=5 // pred_fallthru
      _
    %p1324 = scmp.le.s32.totalorder 2, %s11
    // Predicated region
    $region45: #{basic_block_forward.1} parent=5 // pred_check
      %p1325 = pneg %p1324
    $region46: #{basic_block_forward.1} parent=5 // pred_check_branch
      %1327 = sbr.rel (%p1325) target = $region48
    $region47: #{basic_block_forward.1} parent=5 // pred_region
      %s1328 = ssub.s32 %s11, 2
      // Predicated region
      $region49: #{basic_block_forward.1} parent=47 // pred_check
        %p1329 = pneg %p150
      $region50: #{basic_block_forward.1} parent=47 // pred_check_branch
        %1331 = sbr.rel (%p1329) target = $region52
      $region51: #{basic_block_forward.1} parent=47 // pred_region
        %p1332 = scmp.lt.s32.totalorder %s17, 1
        %s1333 = scalar_select %p1332, %s17, 1
        %s1334 = smul.addr %s1333, 12
        %s1335 = smul.addr %s1334, 4
        %s1336 = scalar_lea.vmem %s5, %s1335
      $region52: #{basic_block_forward.1} parent=47 // pred_fallthru
        _
    $region48: #{basic_block_forward.1} parent=5 // pred_fallthru
      _
  $region6: #{basic_block_forward.1} parent=0 // loop_footer
    %s15 = sadd.s32 1, %s11
  $region7: #{basic_block_forward.1} parent=0 // loop_footer_branch
    %10 = sbr.rel target = $region3
  $region8: #{basic_block_forward.1} parent=0 // loop_exit
    _

</llo_original>
